<compile_context>
chip_gen: v7x
topology: tpu7x:2x2x1
jax: 0.10.0
libtpu: 0.0.40
codegen_flags: <defaults>
</compile_context>

<pallas_src>
import jax
import jax.numpy as jnp
from jax.experimental import pallas as pl
from jax.experimental.pallas import tpu as pltpu


_TAPS = ((-1, -1), (-1, 0), (-1, 1),
         (0, -1), (0, 0), (0, 1),
         (1, -1), (1, 0), (1, 1))


def _round_up(n, m):
    return ((n + m - 1) // m) * m


def _make_sff_kernel(H, W, C):
    HW = H * W
    Ch = C // 2
    LPAD = _round_up(W + 1, 128)      # 128-aligned interior start (covers top padding)
    RPAD = _round_up(W + 1, 128)      # right zero zone, 128-multiple -> unmasked store
    PW = LPAD + HW + RPAD             # padded flat width per channel row

    def kernel(xl_ref, xg_ref,
               w1a_ref, w1b_ref, b1a_ref, b1b_ref,
               w2a_ref, w2b_ref, b2a_ref, b2b_ref,
               w3_ref, b3_ref,
               out_ref, pad_ref, col_ref):
        f32 = jnp.float32

        # Column-validity masks that kill the row-wrap of the flattened spatial layout.
        # Built once per step (2 compares over HW lanes) and reused by all three convs.
        xpos = jax.lax.broadcasted_iota(jnp.int32, (1, HW), 1) % W
        valid_l = xpos >= 1            # tap kx == -1 reads column x-1
        valid_r = xpos <= W - 2        # tap kx == +1 reads column x+1

        # Re-zero only the border zones (full-width, lane-aligned stores); interiors are
        # fully overwritten below.  Done every step so megacore sharding stays correct.
        nrows = pad_ref.shape[0]
        pad_ref[:, 0:LPAD] = jnp.zeros((nrows, LPAD), f32)
        pad_ref[:, LPAD + HW:PW] = jnp.zeros((nrows, RPAD), f32)

        def build_cols(cin):
            # im2col: col[t*cin:(t+1)*cin, p] = padded_input[:, p + ky*W + kx]
            # Only the six kx=+-1 taps need the wrap mask; kx=0 taps store straight.
            for t, (ky, kx) in enumerate(_TAPS):
                start = LPAD + ky * W + kx
                win = pad_ref[0:cin, start:start + HW]
                if kx == -1:
                    win = jnp.where(valid_l, win, 0.0)
                elif kx == 1:
                    win = jnp.where(valid_r, win, 0.0)
                col_ref[t * cin:(t + 1) * cin, :] = win

        def conv_dot(w_ref, b_ref, k):
            # (Cout, k) x (k, HW) on the MXU, f32 accumulation, bias lane-broadcast.
            return jnp.dot(w_ref[...], col_ref[0:k, :],
                           preferred_element_type=f32) + b_ref[...]

        xl = xl_ref[...].astype(f32)             # (C, HW), lane-dense
        xg = xg_ref[...].astype(f32)

        # ---- conv1: (2C -> 2C), 3x3, pad 1, then SimpleGate -> C channels ----
        pad_ref[0:C, LPAD:LPAD + HW] = xl        # concat([x_local, x_global], channel)
        pad_ref[C:2 * C, LPAD:LPAD + HW] = xg
        build_cols(2 * C)
        g1 = (conv_dot(w1a_ref, b1a_ref, 18 * C) *
              conv_dot(w1b_ref, b1b_ref, 18 * C))          # (C, HW)

        # ---- conv2: (C -> C), 3x3, pad 1, then SimpleGate -> C/2 channels ----
        pad_ref[0:C, LPAD:LPAD + HW] = g1
        build_cols(C)
        g2 = (conv_dot(w2a_ref, b2a_ref, 9 * C) *
              conv_dot(w2b_ref, b2b_ref, 9 * C))           # (C/2, HW)

        # ---- conv3: (C/2 -> 2), 3x3, pad 1, then sigmoid -> attention --------
        pad_ref[0:Ch, LPAD:LPAD + HW] = g2
        build_cols(Ch)
        attn = jax.nn.sigmoid(conv_dot(w3_ref, b3_ref, 9 * Ch))   # (2, HW)

        # Blend: lane-dense (C, HW) output store.
        out = xl * attn[0:1, :] + xg * attn[1:2, :]
        out_ref[...] = out.astype(out_ref.dtype)

    return kernel, PW


def selective_feature_fusion(x_local, x_global, params):
    """x_local, x_global: (B, C, H, W) (PyTorch NCHW). Returns (B, C, H, W)."""
    B, C, H, W = x_local.shape
    assert C % 2 == 0
    HW = H * W
    Ch = C // 2
    w1, b1, w2, b2, w3, b3 = params              # OIHW conv weights, (Cout,) biases

    def to_lhs(w):
        # OIHW (Cout, Cin, 3, 3) -> (Cout, 9*Cin), columns ordered tap-major / Cin-minor
        # to match the im2col row layout built in the kernel.
        co, ci = w.shape[0], w.shape[1]
        return jnp.transpose(w, (0, 2, 3, 1)).reshape(co, 9 * ci).astype(jnp.float32)

    w1f, w2f, w3f = to_lhs(w1), to_lhs(w2), to_lhs(w3)
    b1 = b1.astype(jnp.float32)
    b2 = b2.astype(jnp.float32)
    b3 = b3.astype(jnp.float32)
    # Split along Cout so SimpleGate becomes a plain VPU multiply of two matmul results.
    w1a, w1b = w1f[:C], w1f[C:]
    b1a, b1b = b1[:C].reshape(C, 1), b1[C:].reshape(C, 1)
    w2a, w2b = w2f[:Ch], w2f[Ch:]
    b2a, b2b = b2[:Ch].reshape(Ch, 1), b2[Ch:].reshape(Ch, 1)
    b3r = b3.reshape(2, 1)

    xl = x_local.reshape(B, C, HW)               # lane-dense (channels, H*W) per batch
    xg = x_global.reshape(B, C, HW)

    kernel, PW = _make_sff_kernel(H, W, C)

    img_spec = pl.BlockSpec((pl.Squeezed(), C, HW), lambda b: (b, 0, 0))

    def const_spec(arr):
        # Constant block index -> Pallas fetches the parameter once and keeps it
        # resident in VMEM across the batch grid.
        return pl.BlockSpec(arr.shape, lambda b: (0, 0))

    params_flat = (w1a, w1b, b1a, b1b, w2a, w2b, b2a, b2b, w3f, b3r)

    grid_spec = pltpu.PrefetchScalarGridSpec(
        num_scalar_prefetch=0,
        grid=(B,),
        in_specs=[img_spec, img_spec] + [const_spec(p) for p in params_flat],
        out_specs=img_spec,
        scratch_shapes=[
            pltpu.VMEM((2 * C, PW), jnp.float32),     # flat zero-padded rows
            pltpu.VMEM((18 * C, HW), jnp.float32),    # im2col slab (max K = 9*2C)
        ],
    )

    out = pl.pallas_call(
        kernel,
        out_shape=jax.ShapeDtypeStruct((B, C, HW), x_local.dtype),
        grid_spec=grid_spec,
        compiler_params=pltpu.CompilerParams(dimension_semantics=("parallel",)),
    )(xl, xg, *params_flat)
    return out.reshape(B, C, H, W)


def _ref_forward(xl, xg, params):
    """Pure-JAX NCHW/OIHW reference of the PyTorch module."""
    w1, b1, w2, b2, w3, b3 = params

    def conv(x, w, b):
        y = jax.lax.conv_general_dilated(
            x, w, window_strides=(1, 1), padding=[(1, 1), (1, 1)],
            dimension_numbers=("NCHW", "OIHW", "NCHW"))
        return y + b.reshape(1, -1, 1, 1)

    x = jnp.concatenate([xl, xg], axis=1)
    y = conv(x, w1, b1)
    c = y.shape[1] // 2
    y = y[:, :c] * y[:, c:]                      # SimpleGate
    y = conv(y, w2, b2)
    c = y.shape[1] // 2
    y = y[:, :c] * y[:, c:]                      # SimpleGate
    y = conv(y, w3, b3)
    a = jax.nn.sigmoid(y)
    return xl * a[:, 0:1] + xg * a[:, 1:2]


if __name__ == "__main__":
    B, C, H, W = 2, 4, 16, 16                    # in_channel = 4 (small test size)
    key = jax.random.PRNGKey(0)
    ks = jax.random.split(key, 8)

    # PyTorch-layout inputs and parameters (NCHW data, OIHW conv weights).
    x_local = jax.random.normal(ks[0], (B, C, H, W), jnp.float32)
    x_global = jax.random.normal(ks[1], (B, C, H, W), jnp.float32)

    w1 = 0.1 * jax.random.normal(ks[2], (2 * C, 2 * C, 3, 3), jnp.float32)
    b1 = 0.1 * jax.random.normal(ks[3], (2 * C,), jnp.float32)
    w2 = 0.1 * jax.random.normal(ks[4], (C, C, 3, 3), jnp.float32)
    b2 = 0.1 * jax.random.normal(ks[5], (C,), jnp.float32)
    w3 = 0.1 * jax.random.normal(ks[6], (2, C // 2, 3, 3), jnp.float32)
    b3 = 0.1 * jax.random.normal(ks[7], (2,), jnp.float32)
    params = (w1, b1, w2, b2, w3, b3)

    out = selective_feature_fusion(x_local, x_global, params)
    out = jax.block_until_ready(out)

    ref = _ref_forward(x_local, x_global, params)
    assert out.shape == (B, C, H, W)
    err = float(jnp.max(jnp.abs(out - ref)))
    # 1e-3 covers MXU default-precision accumulation-order differences vs. lax.conv.
    assert jnp.allclose(out, ref, atol=1e-3, rtol=1e-3), f"max abs err = {err}"

    print("KERNEL_OK")
</pallas_src>

<mosaic_0001>
module attributes {stable_mosaic.version = 11 : i64} {
  func.func @kernel(%arg0: i32, %arg1: memref<1x4x256xf32, #tpu.memory_space<vmem>>, %arg2: memref<1x4x256xf32, #tpu.memory_space<vmem>>, %arg3: memref<4x72xf32, #tpu.memory_space<vmem>>, %arg4: memref<4x72xf32, #tpu.memory_space<vmem>>, %arg5: memref<4x1xf32, #tpu.memory_space<vmem>>, %arg6: memref<4x1xf32, #tpu.memory_space<vmem>>, %arg7: memref<2x36xf32, #tpu.memory_space<vmem>>, %arg8: memref<2x36xf32, #tpu.memory_space<vmem>>, %arg9: memref<2x1xf32, #tpu.memory_space<vmem>>, %arg10: memref<2x1xf32, #tpu.memory_space<vmem>>, %arg11: memref<2x18xf32, #tpu.memory_space<vmem>>, %arg12: memref<2x1xf32, #tpu.memory_space<vmem>>, %arg13: memref<1x4x256xf32, #tpu.memory_space<vmem>>, %arg14: memref<8x512xf32, #tpu.memory_space<vmem>>, %arg15: memref<72x256xf32, #tpu.memory_space<vmem>>) attributes {dimension_semantics = [#tpu.dimension_semantics<parallel>], iteration_bounds = array<i64: 2>, scalar_prefetch = 0 : i64, scratch_operands = 2 : i64, tpu.core_type = #tpu.core_type<tc>, window_params = [{transform_indices = @transform_0, window_bounds = array<i64: 1, 4, 256>}, {transform_indices = @transform_1, window_bounds = array<i64: 1, 4, 256>}, {pipeline_mode = #tpu.pipeline_mode<synchronous>, transform_indices = @transform_2, window_bounds = array<i64: 4, 72>}, {pipeline_mode = #tpu.pipeline_mode<synchronous>, transform_indices = @transform_3, window_bounds = array<i64: 4, 72>}, {pipeline_mode = #tpu.pipeline_mode<synchronous>, transform_indices = @transform_4, window_bounds = array<i64: 4, 1>}, {pipeline_mode = #tpu.pipeline_mode<synchronous>, transform_indices = @transform_5, window_bounds = array<i64: 4, 1>}, {pipeline_mode = #tpu.pipeline_mode<synchronous>, transform_indices = @transform_6, window_bounds = array<i64: 2, 36>}, {pipeline_mode = #tpu.pipeline_mode<synchronous>, transform_indices = @transform_7, window_bounds = array<i64: 2, 36>}, {pipeline_mode = #tpu.pipeline_mode<synchronous>, transform_indices = @transform_8, window_bounds = array<i64: 2, 1>}, {pipeline_mode = #tpu.pipeline_mode<synchronous>, transform_indices = @transform_9, window_bounds = array<i64: 2, 1>}, {pipeline_mode = #tpu.pipeline_mode<synchronous>, transform_indices = @transform_10, window_bounds = array<i64: 2, 18>}, {pipeline_mode = #tpu.pipeline_mode<synchronous>, transform_indices = @transform_11, window_bounds = array<i64: 2, 1>}, {transform_indices = @transform_12, window_bounds = array<i64: 1, 4, 256>}]} {
    %0 = tpu.iota {dimensions = array<i32: 1>} : vector<1x256xi32>
    %c16_i32 = arith.constant 16 : i32
    %c0_i32 = arith.constant 0 : i32
    %1 = arith.cmpi eq, %c16_i32, %c0_i32 : i32
    %c1_i32 = arith.constant 1 : i32
    %2 = arith.select %1, %c1_i32, %c16_i32 : i32
    %3 = vector.broadcast %2 : i32 to vector<1x256xi32>
    %4 = arith.remsi %0, %3 : vector<1x256xi32>
    %c0_i32_0 = arith.constant 0 : i32
    %5 = vector.broadcast %c0_i32_0 : i32 to vector<1x256xi32>
    %6 = arith.cmpi ne, %4, %5 : vector<1x256xi32>
    %c0_i32_1 = arith.constant 0 : i32
    %7 = vector.broadcast %c0_i32_1 : i32 to vector<1x256xi32>
    %8 = arith.cmpi slt, %4, %7 : vector<1x256xi32>
    %c0_i32_2 = arith.constant 0 : i32
    %9 = arith.cmpi slt, %2, %c0_i32_2 : i32
    %10 = vector.broadcast %9 : i1 to vector<1x256xi1>
    %11 = vector.broadcast %10 : vector<1x256xi1> to vector<1x256xi1>
    %12 = arith.xori %8, %11 : vector<1x256xi1>
    %13 = arith.andi %12, %6 : vector<1x256xi1>
    %14 = vector.broadcast %2 : i32 to vector<1x256xi32>
    %15 = arith.addi %4, %14 : vector<1x256xi32>
    %16 = arith.select %13, %15, %4 : vector<1x256xi1>, vector<1x256xi32>
    %c1_i32_3 = arith.constant 1 : i32
    %17 = vector.broadcast %c1_i32_3 : i32 to vector<1x256xi32>
    %18 = arith.cmpi sge, %16, %17 : vector<1x256xi32>
    %c14_i32 = arith.constant 14 : i32
    %19 = vector.broadcast %c14_i32 : i32 to vector<1x256xi32>
    %20 = arith.cmpi sle, %16, %19 : vector<1x256xi32>
    %cst = arith.constant 0.000000e+00 : f32
    %21 = vector.broadcast %cst : f32 to vector<8x128xf32>
    %c0 = arith.constant 0 : index
    %c0_4 = arith.constant 0 : index
    %22 = vector.load %arg14[%c0, %c0_4] : memref<8x512xf32, #tpu.memory_space<vmem>>, vector<8x128xf32>
    tpu.vector_store %arg14[%c0, %c0_4], %21 {strides = array<i32>} : memref<8x512xf32, #tpu.memory_space<vmem>>, vector<8x128xf32>,
    %cst_5 = arith.constant 0.000000e+00 : f32
    %23 = vector.broadcast %cst_5 : f32 to vector<8x128xf32>
    %c0_6 = arith.constant 0 : index
    %c384 = arith.constant 384 : index
    %24 = vector.load %arg14[%c0_6, %c384] : memref<8x512xf32, #tpu.memory_space<vmem>>, vector<8x128xf32>
    tpu.vector_store %arg14[%c0_6, %c384], %23 {strides = array<i32>} : memref<8x512xf32, #tpu.memory_space<vmem>>, vector<8x128xf32>,
    %c0_7 = arith.constant 0 : index
    %c0_8 = arith.constant 0 : index
    %c0_9 = arith.constant 0 : index
    %25 = vector.load %arg1[%c0_7, %c0_8, %c0_9] : memref<1x4x256xf32, #tpu.memory_space<vmem>>, vector<1x4x256xf32>
    %26 = vector.shape_cast %25 : vector<1x4x256xf32> to vector<4x256xf32>
    %c0_10 = arith.constant 0 : index
    %c0_11 = arith.constant 0 : index
    %c0_12 = arith.constant 0 : index
    %27 = vector.load %arg2[%c0_10, %c0_11, %c0_12] : memref<1x4x256xf32, #tpu.memory_space<vmem>>, vector<1x4x256xf32>
    %28 = vector.shape_cast %27 : vector<1x4x256xf32> to vector<4x256xf32>
    %c0_13 = arith.constant 0 : index
    %c128 = arith.constant 128 : index
    %29 = vector.load %arg14[%c0_13, %c128] : memref<8x512xf32, #tpu.memory_space<vmem>>, vector<4x256xf32>
    tpu.vector_store %arg14[%c0_13, %c128], %26 {strides = array<i32>} : memref<8x512xf32, #tpu.memory_space<vmem>>, vector<4x256xf32>,
    %c4 = arith.constant 4 : index
    %c128_14 = arith.constant 128 : index
    %30 = vector.load %arg14[%c4, %c128_14] : memref<8x512xf32, #tpu.memory_space<vmem>>, vector<4x256xf32>
    tpu.vector_store %arg14[%c4, %c128_14], %28 {strides = array<i32>} : memref<8x512xf32, #tpu.memory_space<vmem>>, vector<4x256xf32>,
    %c0_15 = arith.constant 0 : index
    %c111 = arith.constant 111 : index
    %31 = vector.load %arg14[%c0_15, %c111] : memref<8x512xf32, #tpu.memory_space<vmem>>, vector<8x256xf32>
    %cst_16 = arith.constant 0.000000e+00 : f32
    %32 = vector.shape_cast %18 : vector<1x256xi1> to vector<1x256xi1>
    %33 = vector.broadcast %32 : vector<1x256xi1> to vector<8x256xi1>
    %34 = vector.broadcast %cst_16 : f32 to vector<8x256xf32>
    %35 = arith.select %33, %31, %34 : vector<8x256xi1>, vector<8x256xf32>
    %c0_17 = arith.constant 0 : index
    %c0_18 = arith.constant 0 : index
    %36 = vector.load %arg15[%c0_17, %c0_18] : memref<72x256xf32, #tpu.memory_space<vmem>>, vector<8x256xf32>
    tpu.vector_store %arg15[%c0_17, %c0_18], %35 {strides = array<i32>} : memref<72x256xf32, #tpu.memory_space<vmem>>, vector<8x256xf32>,
    %c0_19 = arith.constant 0 : index
    %c112 = arith.constant 112 : index
    %37 = vector.load %arg14[%c0_19, %c112] : memref<8x512xf32, #tpu.memory_space<vmem>>, vector<8x256xf32>
    %c8 = arith.constant 8 : index
    %c0_20 = arith.constant 0 : index
    %38 = vector.load %arg15[%c8, %c0_20] : memref<72x256xf32, #tpu.memory_space<vmem>>, vector<8x256xf32>
    tpu.vector_store %arg15[%c8, %c0_20], %37 {strides = array<i32>} : memref<72x256xf32, #tpu.memory_space<vmem>>, vector<8x256xf32>,
    %c0_21 = arith.constant 0 : index
    %c113 = arith.constant 113 : index
    %39 = vector.load %arg14[%c0_21, %c113] : memref<8x512xf32, #tpu.memory_space<vmem>>, vector<8x256xf32>
    %cst_22 = arith.constant 0.000000e+00 : f32
    %40 = vector.shape_cast %20 : vector<1x256xi1> to vector<1x256xi1>
    %41 = vector.broadcast %40 : vector<1x256xi1> to vector<8x256xi1>
    %42 = vector.broadcast %cst_22 : f32 to vector<8x256xf32>
    %43 = arith.select %41, %39, %42 : vector<8x256xi1>, vector<8x256xf32>
    %c16 = arith.constant 16 : index
    %c0_23 = arith.constant 0 : index
    %44 = vector.load %arg15[%c16, %c0_23] : memref<72x256xf32, #tpu.memory_space<vmem>>, vector<8x256xf32>
    tpu.vector_store %arg15[%c16, %c0_23], %43 {strides = array<i32>} : memref<72x256xf32, #tpu.memory_space<vmem>>, vector<8x256xf32>,
    %c0_24 = arith.constant 0 : index
    %c127 = arith.constant 127 : index
    %45 = vector.load %arg14[%c0_24, %c127] : memref<8x512xf32, #tpu.memory_space<vmem>>, vector<8x256xf32>
    %cst_25 = arith.constant 0.000000e+00 : f32
    %46 = vector.shape_cast %18 : vector<1x256xi1> to vector<1x256xi1>
    %47 = vector.broadcast %46 : vector<1x256xi1> to vector<8x256xi1>
    %48 = vector.broadcast %cst_25 : f32 to vector<8x256xf32>
    %49 = arith.select %47, %45, %48 : vector<8x256xi1>, vector<8x256xf32>
    %c24 = arith.constant 24 : index
    %c0_26 = arith.constant 0 : index
    %50 = vector.load %arg15[%c24, %c0_26] : memref<72x256xf32, #tpu.memory_space<vmem>>, vector<8x256xf32>
    tpu.vector_store %arg15[%c24, %c0_26], %49 {strides = array<i32>} : memref<72x256xf32, #tpu.memory_space<vmem>>, vector<8x256xf32>,
    %c0_27 = arith.constant 0 : index
    %c128_28 = arith.constant 128 : index
    %51 = vector.load %arg14[%c0_27, %c128_28] : memref<8x512xf32, #tpu.memory_space<vmem>>, vector<8x256xf32>
    %c32 = arith.constant 32 : index
    %c0_29 = arith.constant 0 : index
    %52 = vector.load %arg15[%c32, %c0_29] : memref<72x256xf32, #tpu.memory_space<vmem>>, vector<8x256xf32>
    tpu.vector_store %arg15[%c32, %c0_29], %51 {strides = array<i32>} : memref<72x256xf32, #tpu.memory_space<vmem>>, vector<8x256xf32>,
    %c0_30 = arith.constant 0 : index
    %c129 = arith.constant 129 : index
    %53 = vector.load %arg14[%c0_30, %c129] : memref<8x512xf32, #tpu.memory_space<vmem>>, vector<8x256xf32>
    %cst_31 = arith.constant 0.000000e+00 : f32
    %54 = vector.shape_cast %20 : vector<1x256xi1> to vector<1x256xi1>
    %55 = vector.broadcast %54 : vector<1x256xi1> to vector<8x256xi1>
    %56 = vector.broadcast %cst_31 : f32 to vector<8x256xf32>
    %57 = arith.select %55, %53, %56 : vector<8x256xi1>, vector<8x256xf32>
    %c40 = arith.constant 40 : index
    %c0_32 = arith.constant 0 : index
    %58 = vector.load %arg15[%c40, %c0_32] : memref<72x256xf32, #tpu.memory_space<vmem>>, vector<8x256xf32>
    tpu.vector_store %arg15[%c40, %c0_32], %57 {strides = array<i32>} : memref<72x256xf32, #tpu.memory_space<vmem>>, vector<8x256xf32>,
    %c0_33 = arith.constant 0 : index
    %c143 = arith.constant 143 : index
    %59 = vector.load %arg14[%c0_33, %c143] : memref<8x512xf32, #tpu.memory_space<vmem>>, vector<8x256xf32>
    %cst_34 = arith.constant 0.000000e+00 : f32
    %60 = vector.shape_cast %18 : vector<1x256xi1> to vector<1x256xi1>
    %61 = vector.broadcast %60 : vector<1x256xi1> to vector<8x256xi1>
    %62 = vector.broadcast %cst_34 : f32 to vector<8x256xf32>
    %63 = arith.select %61, %59, %62 : vector<8x256xi1>, vector<8x256xf32>
    %c48 = arith.constant 48 : index
    %c0_35 = arith.constant 0 : index
    %64 = vector.load %arg15[%c48, %c0_35] : memref<72x256xf32, #tpu.memory_space<vmem>>, vector<8x256xf32>
    tpu.vector_store %arg15[%c48, %c0_35], %63 {strides = array<i32>} : memref<72x256xf32, #tpu.memory_space<vmem>>, vector<8x256xf32>,
    %c0_36 = arith.constant 0 : index
    %c144 = arith.constant 144 : index
    %65 = vector.load %arg14[%c0_36, %c144] : memref<8x512xf32, #tpu.memory_space<vmem>>, vector<8x256xf32>
    %c56 = arith.constant 56 : index
    %c0_37 = arith.constant 0 : index
    %66 = vector.load %arg15[%c56, %c0_37] : memref<72x256xf32, #tpu.memory_space<vmem>>, vector<8x256xf32>
    tpu.vector_store %arg15[%c56, %c0_37], %65 {strides = array<i32>} : memref<72x256xf32, #tpu.memory_space<vmem>>, vector<8x256xf32>,
    %c0_38 = arith.constant 0 : index
    %c145 = arith.constant 145 : index
    %67 = vector.load %arg14[%c0_38, %c145] : memref<8x512xf32, #tpu.memory_space<vmem>>, vector<8x256xf32>
    %cst_39 = arith.constant 0.000000e+00 : f32
    %68 = vector.shape_cast %20 : vector<1x256xi1> to vector<1x256xi1>
    %69 = vector.broadcast %68 : vector<1x256xi1> to vector<8x256xi1>
    %70 = vector.broadcast %cst_39 : f32 to vector<8x256xf32>
    %71 = arith.select %69, %67, %70 : vector<8x256xi1>, vector<8x256xf32>
    %c64 = arith.constant 64 : index
    %c0_40 = arith.constant 0 : index
    %72 = vector.load %arg15[%c64, %c0_40] : memref<72x256xf32, #tpu.memory_space<vmem>>, vector<8x256xf32>
    tpu.vector_store %arg15[%c64, %c0_40], %71 {strides = array<i32>} : memref<72x256xf32, #tpu.memory_space<vmem>>, vector<8x256xf32>,
    %c0_41 = arith.constant 0 : index
    %c0_42 = arith.constant 0 : index
    %73 = vector.load %arg3[%c0_41, %c0_42] : memref<4x72xf32, #tpu.memory_space<vmem>>, vector<4x72xf32>
    %c0_43 = arith.constant 0 : index
    %c0_44 = arith.constant 0 : index
    %74 = vector.load %arg15[%c0_43, %c0_44] : memref<72x256xf32, #tpu.memory_space<vmem>>, vector<72x256xf32>
    %cst_45 = arith.constant dense<0.000000e+00> : vector<4x256xf32>
    %75 = tpu.matmul %73, %74, %cst_45 {dimension_numbers = #tpu.dot_dimension_numbers<[1], [0], [0], [1], [0, 0, 1, 1], [], []>} : vector<4x72xf32>, vector<72x256xf32>, vector<4x256xf32> -> vector<4x256xf32>
    %c0_46 = arith.constant 0 : index
    %c0_47 = arith.constant 0 : index
    %76 = vector.load %arg5[%c0_46, %c0_47] : memref<4x1xf32, #tpu.memory_space<vmem>>, vector<4x1xf32>
    %77 = vector.broadcast %76 : vector<4x1xf32> to vector<4x256xf32>
    %78 = arith.addf %75, %77 : vector<4x256xf32>
    %c0_48 = arith.constant 0 : index
    %c0_49 = arith.constant 0 : index
    %79 = vector.load %arg4[%c0_48, %c0_49] : memref<4x72xf32, #tpu.memory_space<vmem>>, vector<4x72xf32>
    %c0_50 = arith.constant 0 : index
    %c0_51 = arith.constant 0 : index
    %80 = vector.load %arg15[%c0_50, %c0_51] : memref<72x256xf32, #tpu.memory_space<vmem>>, vector<72x256xf32>
    %cst_52 = arith.constant dense<0.000000e+00> : vector<4x256xf32>
    %81 = tpu.matmul %79, %80, %cst_52 {dimension_numbers = #tpu.dot_dimension_numbers<[1], [0], [0], [1], [0, 0, 1, 1], [], []>} : vector<4x72xf32>, vector<72x256xf32>, vector<4x256xf32> -> vector<4x256xf32>
    %c0_53 = arith.constant 0 : index
    %c0_54 = arith.constant 0 : index
    %82 = vector.load %arg6[%c0_53, %c0_54] : memref<4x1xf32, #tpu.memory_space<vmem>>, vector<4x1xf32>
    %83 = vector.broadcast %82 : vector<4x1xf32> to vector<4x256xf32>
    %84 = arith.addf %81, %83 : vector<4x256xf32>
    %85 = arith.mulf %78, %84 : vector<4x256xf32>
    %c0_55 = arith.constant 0 : index
    %c128_56 = arith.constant 128 : index
    %86 = vector.load %arg14[%c0_55, %c128_56] : memref<8x512xf32, #tpu.memory_space<vmem>>, vector<4x256xf32>
    tpu.vector_store %arg14[%c0_55, %c128_56], %85 {strides = array<i32>} : memref<8x512xf32, #tpu.memory_space<vmem>>, vector<4x256xf32>,
    %c0_57 = arith.constant 0 : index
    %c111_58 = arith.constant 111 : index
    %87 = vector.load %arg14[%c0_57, %c111_58] : memref<8x512xf32, #tpu.memory_space<vmem>>, vector<4x256xf32>
    %cst_59 = arith.constant 0.000000e+00 : f32
    %88 = vector.shape_cast %18 : vector<1x256xi1> to vector<1x256xi1>
    %89 = vector.broadcast %88 : vector<1x256xi1> to vector<4x256xi1>
    %90 = vector.broadcast %cst_59 : f32 to vector<4x256xf32>
    %91 = arith.select %89, %87, %90 : vector<4x256xi1>, vector<4x256xf32>
    %c0_60 = arith.constant 0 : index
    %c0_61 = arith.constant 0 : index
    %92 = vector.load %arg15[%c0_60, %c0_61] : memref<72x256xf32, #tpu.memory_space<vmem>>, vector<4x256xf32>
    tpu.vector_store %arg15[%c0_60, %c0_61], %91 {strides = array<i32>} : memref<72x256xf32, #tpu.memory_space<vmem>>, vector<4x256xf32>,
    %c0_62 = arith.constant 0 : index
    %c112_63 = arith.constant 112 : index
    %93 = vector.load %arg14[%c0_62, %c112_63] : memref<8x512xf32, #tpu.memory_space<vmem>>, vector<4x256xf32>
    %c4_64 = arith.constant 4 : index
    %c0_65 = arith.constant 0 : index
    %94 = vector.load %arg15[%c4_64, %c0_65] : memref<72x256xf32, #tpu.memory_space<vmem>>, vector<4x256xf32>
    tpu.vector_store %arg15[%c4_64, %c0_65], %93 {strides = array<i32>} : memref<72x256xf32, #tpu.memory_space<vmem>>, vector<4x256xf32>,
    %c0_66 = arith.constant 0 : index
    %c113_67 = arith.constant 113 : index
    %95 = vector.load %arg14[%c0_66, %c113_67] : memref<8x512xf32, #tpu.memory_space<vmem>>, vector<4x256xf32>
    %cst_68 = arith.constant 0.000000e+00 : f32
    %96 = vector.shape_cast %20 : vector<1x256xi1> to vector<1x256xi1>
    %97 = vector.broadcast %96 : vector<1x256xi1> to vector<4x256xi1>
    %98 = vector.broadcast %cst_68 : f32 to vector<4x256xf32>
    %99 = arith.select %97, %95, %98 : vector<4x256xi1>, vector<4x256xf32>
    %c8_69 = arith.constant 8 : index
    %c0_70 = arith.constant 0 : index
    %100 = vector.load %arg15[%c8_69, %c0_70] : memref<72x256xf32, #tpu.memory_space<vmem>>, vector<4x256xf32>
    tpu.vector_store %arg15[%c8_69, %c0_70], %99 {strides = array<i32>} : memref<72x256xf32, #tpu.memory_space<vmem>>, vector<4x256xf32>,
    %c0_71 = arith.constant 0 : index
    %c127_72 = arith.constant 127 : index
    %101 = vector.load %arg14[%c0_71, %c127_72] : memref<8x512xf32, #tpu.memory_space<vmem>>, vector<4x256xf32>
    %cst_73 = arith.constant 0.000000e+00 : f32
    %102 = vector.shape_cast %18 : vector<1x256xi1> to vector<1x256xi1>
    %103 = vector.broadcast %102 : vector<1x256xi1> to vector<4x256xi1>
    %104 = vector.broadcast %cst_73 : f32 to vector<4x256xf32>
    %105 = arith.select %103, %101, %104 : vector<4x256xi1>, vector<4x256xf32>
    %c12 = arith.constant 12 : index
    %c0_74 = arith.constant 0 : index
    %106 = vector.load %arg15[%c12, %c0_74] : memref<72x256xf32, #tpu.memory_space<vmem>>, vector<4x256xf32>
    tpu.vector_store %arg15[%c12, %c0_74], %105 {strides = array<i32>} : memref<72x256xf32, #tpu.memory_space<vmem>>, vector<4x256xf32>,
    %c0_75 = arith.constant 0 : index
    %c128_76 = arith.constant 128 : index
    %107 = vector.load %arg14[%c0_75, %c128_76] : memref<8x512xf32, #tpu.memory_space<vmem>>, vector<4x256xf32>
    %c16_77 = arith.constant 16 : index
    %c0_78 = arith.constant 0 : index
    %108 = vector.load %arg15[%c16_77, %c0_78] : memref<72x256xf32, #tpu.memory_space<vmem>>, vector<4x256xf32>
    tpu.vector_store %arg15[%c16_77, %c0_78], %107 {strides = array<i32>} : memref<72x256xf32, #tpu.memory_space<vmem>>, vector<4x256xf32>,
    %c0_79 = arith.constant 0 : index
    %c129_80 = arith.constant 129 : index
    %109 = vector.load %arg14[%c0_79, %c129_80] : memref<8x512xf32, #tpu.memory_space<vmem>>, vector<4x256xf32>
    %cst_81 = arith.constant 0.000000e+00 : f32
    %110 = vector.shape_cast %20 : vector<1x256xi1> to vector<1x256xi1>
    %111 = vector.broadcast %110 : vector<1x256xi1> to vector<4x256xi1>
    %112 = vector.broadcast %cst_81 : f32 to vector<4x256xf32>
    %113 = arith.select %111, %109, %112 : vector<4x256xi1>, vector<4x256xf32>
    %c20 = arith.constant 20 : index
    %c0_82 = arith.constant 0 : index
    %114 = vector.load %arg15[%c20, %c0_82] : memref<72x256xf32, #tpu.memory_space<vmem>>, vector<4x256xf32>
    tpu.vector_store %arg15[%c20, %c0_82], %113 {strides = array<i32>} : memref<72x256xf32, #tpu.memory_space<vmem>>, vector<4x256xf32>,
    %c0_83 = arith.constant 0 : index
    %c143_84 = arith.constant 143 : index
    %115 = vector.load %arg14[%c0_83, %c143_84] : memref<8x512xf32, #tpu.memory_space<vmem>>, vector<4x256xf32>
    %cst_85 = arith.constant 0.000000e+00 : f32
    %116 = vector.shape_cast %18 : vector<1x256xi1> to vector<1x256xi1>
    %117 = vector.broadcast %116 : vector<1x256xi1> to vector<4x256xi1>
    %118 = vector.broadcast %cst_85 : f32 to vector<4x256xf32>
    %119 = arith.select %117, %115, %118 : vector<4x256xi1>, vector<4x256xf32>
    %c24_86 = arith.constant 24 : index
    %c0_87 = arith.constant 0 : index
    %120 = vector.load %arg15[%c24_86, %c0_87] : memref<72x256xf32, #tpu.memory_space<vmem>>, vector<4x256xf32>
    tpu.vector_store %arg15[%c24_86, %c0_87], %119 {strides = array<i32>} : memref<72x256xf32, #tpu.memory_space<vmem>>, vector<4x256xf32>,
    %c0_88 = arith.constant 0 : index
    %c144_89 = arith.constant 144 : index
    %121 = vector.load %arg14[%c0_88, %c144_89] : memref<8x512xf32, #tpu.memory_space<vmem>>, vector<4x256xf32>
    %c28 = arith.constant 28 : index
    %c0_90 = arith.constant 0 : index
    %122 = vector.load %arg15[%c28, %c0_90] : memref<72x256xf32, #tpu.memory_space<vmem>>, vector<4x256xf32>
    tpu.vector_store %arg15[%c28, %c0_90], %121 {strides = array<i32>} : memref<72x256xf32, #tpu.memory_space<vmem>>, vector<4x256xf32>,
    %c0_91 = arith.constant 0 : index
    %c145_92 = arith.constant 145 : index
    %123 = vector.load %arg14[%c0_91, %c145_92] : memref<8x512xf32, #tpu.memory_space<vmem>>, vector<4x256xf32>
    %cst_93 = arith.constant 0.000000e+00 : f32
    %124 = vector.shape_cast %20 : vector<1x256xi1> to vector<1x256xi1>
    %125 = vector.broadcast %124 : vector<1x256xi1> to vector<4x256xi1>
    %126 = vector.broadcast %cst_93 : f32 to vector<4x256xf32>
    %127 = arith.select %125, %123, %126 : vector<4x256xi1>, vector<4x256xf32>
    %c32_94 = arith.constant 32 : index
    %c0_95 = arith.constant 0 : index
    %128 = vector.load %arg15[%c32_94, %c0_95] : memref<72x256xf32, #tpu.memory_space<vmem>>, vector<4x256xf32>
    tpu.vector_store %arg15[%c32_94, %c0_95], %127 {strides = array<i32>} : memref<72x256xf32, #tpu.memory_space<vmem>>, vector<4x256xf32>,
    %c0_96 = arith.constant 0 : index
    %c0_97 = arith.constant 0 : index
    %129 = vector.load %arg7[%c0_96, %c0_97] : memref<2x36xf32, #tpu.memory_space<vmem>>, vector<2x36xf32>
    %c0_98 = arith.constant 0 : index
    %c0_99 = arith.constant 0 : index
    %130 = vector.load %arg15[%c0_98, %c0_99] : memref<72x256xf32, #tpu.memory_space<vmem>>, vector<36x256xf32>
    %cst_100 = arith.constant dense<0.000000e+00> : vector<2x256xf32>
    %131 = tpu.matmul %129, %130, %cst_100 {dimension_numbers = #tpu.dot_dimension_numbers<[1], [0], [0], [1], [0, 0, 1, 1], [], []>} : vector<2x36xf32>, vector<36x256xf32>, vector<2x256xf32> -> vector<2x256xf32>
    %c0_101 = arith.constant 0 : index
    %c0_102 = arith.constant 0 : index
    %132 = vector.load %arg9[%c0_101, %c0_102] : memref<2x1xf32, #tpu.memory_space<vmem>>, vector<2x1xf32>
    %133 = vector.broadcast %132 : vector<2x1xf32> to vector<2x256xf32>
    %134 = arith.addf %131, %133 : vector<2x256xf32>
    %c0_103 = arith.constant 0 : index
    %c0_104 = arith.constant 0 : index
    %135 = vector.load %arg8[%c0_103, %c0_104] : memref<2x36xf32, #tpu.memory_space<vmem>>, vector<2x36xf32>
    %c0_105 = arith.constant 0 : index
    %c0_106 = arith.constant 0 : index
    %136 = vector.load %arg15[%c0_105, %c0_106] : memref<72x256xf32, #tpu.memory_space<vmem>>, vector<36x256xf32>
    %cst_107 = arith.constant dense<0.000000e+00> : vector<2x256xf32>
    %137 = tpu.matmul %135, %136, %cst_107 {dimension_numbers = #tpu.dot_dimension_numbers<[1], [0], [0], [1], [0, 0, 1, 1], [], []>} : vector<2x36xf32>, vector<36x256xf32>, vector<2x256xf32> -> vector<2x256xf32>
    %c0_108 = arith.constant 0 : index
    %c0_109 = arith.constant 0 : index
    %138 = vector.load %arg10[%c0_108, %c0_109] : memref<2x1xf32, #tpu.memory_space<vmem>>, vector<2x1xf32>
    %139 = vector.broadcast %138 : vector<2x1xf32> to vector<2x256xf32>
    %140 = arith.addf %137, %139 : vector<2x256xf32>
    %141 = arith.mulf %134, %140 : vector<2x256xf32>
    %c0_110 = arith.constant 0 : index
    %c128_111 = arith.constant 128 : index
    %142 = vector.load %arg14[%c0_110, %c128_111] : memref<8x512xf32, #tpu.memory_space<vmem>>, vector<2x256xf32>
    tpu.vector_store %arg14[%c0_110, %c128_111], %141 {strides = array<i32>} : memref<8x512xf32, #tpu.memory_space<vmem>>, vector<2x256xf32>,
    %c0_112 = arith.constant 0 : index
    %c111_113 = arith.constant 111 : index
    %143 = vector.load %arg14[%c0_112, %c111_113] : memref<8x512xf32, #tpu.memory_space<vmem>>, vector<2x256xf32>
    %cst_114 = arith.constant 0.000000e+00 : f32
    %144 = vector.shape_cast %18 : vector<1x256xi1> to vector<1x256xi1>
    %145 = vector.broadcast %144 : vector<1x256xi1> to vector<2x256xi1>
    %146 = vector.broadcast %cst_114 : f32 to vector<2x256xf32>
    %147 = arith.select %145, %143, %146 : vector<2x256xi1>, vector<2x256xf32>
    %c0_115 = arith.constant 0 : index
    %c0_116 = arith.constant 0 : index
    %148 = vector.load %arg15[%c0_115, %c0_116] : memref<72x256xf32, #tpu.memory_space<vmem>>, vector<2x256xf32>
    tpu.vector_store %arg15[%c0_115, %c0_116], %147 {strides = array<i32>} : memref<72x256xf32, #tpu.memory_space<vmem>>, vector<2x256xf32>,
    %c0_117 = arith.constant 0 : index
    %c112_118 = arith.constant 112 : index
    %149 = vector.load %arg14[%c0_117, %c112_118] : memref<8x512xf32, #tpu.memory_space<vmem>>, vector<2x256xf32>
    %c2 = arith.constant 2 : index
    %c0_119 = arith.constant 0 : index
    %150 = vector.load %arg15[%c2, %c0_119] : memref<72x256xf32, #tpu.memory_space<vmem>>, vector<2x256xf32>
    tpu.vector_store %arg15[%c2, %c0_119], %149 {strides = array<i32>} : memref<72x256xf32, #tpu.memory_space<vmem>>, vector<2x256xf32>,
    %c0_120 = arith.constant 0 : index
    %c113_121 = arith.constant 113 : index
    %151 = vector.load %arg14[%c0_120, %c113_121] : memref<8x512xf32, #tpu.memory_space<vmem>>, vector<2x256xf32>
    %cst_122 = arith.constant 0.000000e+00 : f32
    %152 = vector.shape_cast %20 : vector<1x256xi1> to vector<1x256xi1>
    %153 = vector.broadcast %152 : vector<1x256xi1> to vector<2x256xi1>
    %154 = vector.broadcast %cst_122 : f32 to vector<2x256xf32>
    %155 = arith.select %153, %151, %154 : vector<2x256xi1>, vector<2x256xf32>
    %c4_123 = arith.constant 4 : index
    %c0_124 = arith.constant 0 : index
    %156 = vector.load %arg15[%c4_123, %c0_124] : memref<72x256xf32, #tpu.memory_space<vmem>>, vector<2x256xf32>
    tpu.vector_store %arg15[%c4_123, %c0_124], %155 {strides = array<i32>} : memref<72x256xf32, #tpu.memory_space<vmem>>, vector<2x256xf32>,
    %c0_125 = arith.constant 0 : index
    %c127_126 = arith.constant 127 : index
    %157 = vector.load %arg14[%c0_125, %c127_126] : memref<8x512xf32, #tpu.memory_space<vmem>>, vector<2x256xf32>
    %cst_127 = arith.constant 0.000000e+00 : f32
    %158 = vector.shape_cast %18 : vector<1x256xi1> to vector<1x256xi1>
    %159 = vector.broadcast %158 : vector<1x256xi1> to vector<2x256xi1>
    %160 = vector.broadcast %cst_127 : f32 to vector<2x256xf32>
    %161 = arith.select %159, %157, %160 : vector<2x256xi1>, vector<2x256xf32>
    %c6 = arith.constant 6 : index
    %c0_128 = arith.constant 0 : index
    %162 = vector.load %arg15[%c6, %c0_128] : memref<72x256xf32, #tpu.memory_space<vmem>>, vector<2x256xf32>
    tpu.vector_store %arg15[%c6, %c0_128], %161 {strides = array<i32>} : memref<72x256xf32, #tpu.memory_space<vmem>>, vector<2x256xf32>,
    %c0_129 = arith.constant 0 : index
    %c128_130 = arith.constant 128 : index
    %163 = vector.load %arg14[%c0_129, %c128_130] : memref<8x512xf32, #tpu.memory_space<vmem>>, vector<2x256xf32>
    %c8_131 = arith.constant 8 : index
    %c0_132 = arith.constant 0 : index
    %164 = vector.load %arg15[%c8_131, %c0_132] : memref<72x256xf32, #tpu.memory_space<vmem>>, vector<2x256xf32>
    tpu.vector_store %arg15[%c8_131, %c0_132], %163 {strides = array<i32>} : memref<72x256xf32, #tpu.memory_space<vmem>>, vector<2x256xf32>,
    %c0_133 = arith.constant 0 : index
    %c129_134 = arith.constant 129 : index
    %165 = vector.load %arg14[%c0_133, %c129_134] : memref<8x512xf32, #tpu.memory_space<vmem>>, vector<2x256xf32>
    %cst_135 = arith.constant 0.000000e+00 : f32
    %166 = vector.shape_cast %20 : vector<1x256xi1> to vector<1x256xi1>
    %167 = vector.broadcast %166 : vector<1x256xi1> to vector<2x256xi1>
    %168 = vector.broadcast %cst_135 : f32 to vector<2x256xf32>
    %169 = arith.select %167, %165, %168 : vector<2x256xi1>, vector<2x256xf32>
    %c10 = arith.constant 10 : index
    %c0_136 = arith.constant 0 : index
    %170 = vector.load %arg15[%c10, %c0_136] : memref<72x256xf32, #tpu.memory_space<vmem>>, vector<2x256xf32>
    tpu.vector_store %arg15[%c10, %c0_136], %169 {strides = array<i32>} : memref<72x256xf32, #tpu.memory_space<vmem>>, vector<2x256xf32>,
    %c0_137 = arith.constant 0 : index
    %c143_138 = arith.constant 143 : index
    %171 = vector.load %arg14[%c0_137, %c143_138] : memref<8x512xf32, #tpu.memory_space<vmem>>, vector<2x256xf32>
    %cst_139 = arith.constant 0.000000e+00 : f32
    %172 = vector.shape_cast %18 : vector<1x256xi1> to vector<1x256xi1>
    %173 = vector.broadcast %172 : vector<1x256xi1> to vector<2x256xi1>
    %174 = vector.broadcast %cst_139 : f32 to vector<2x256xf32>
    %175 = arith.select %173, %171, %174 : vector<2x256xi1>, vector<2x256xf32>
    %c12_140 = arith.constant 12 : index
    %c0_141 = arith.constant 0 : index
    %176 = vector.load %arg15[%c12_140, %c0_141] : memref<72x256xf32, #tpu.memory_space<vmem>>, vector<2x256xf32>
    tpu.vector_store %arg15[%c12_140, %c0_141], %175 {strides = array<i32>} : memref<72x256xf32, #tpu.memory_space<vmem>>, vector<2x256xf32>,
    %c0_142 = arith.constant 0 : index
    %c144_143 = arith.constant 144 : index
    %177 = vector.load %arg14[%c0_142, %c144_143] : memref<8x512xf32, #tpu.memory_space<vmem>>, vector<2x256xf32>
    %c14 = arith.constant 14 : index
    %c0_144 = arith.constant 0 : index
    %178 = vector.load %arg15[%c14, %c0_144] : memref<72x256xf32, #tpu.memory_space<vmem>>, vector<2x256xf32>
    tpu.vector_store %arg15[%c14, %c0_144], %177 {strides = array<i32>} : memref<72x256xf32, #tpu.memory_space<vmem>>, vector<2x256xf32>,
    %c0_145 = arith.constant 0 : index
    %c145_146 = arith.constant 145 : index
    %179 = vector.load %arg14[%c0_145, %c145_146] : memref<8x512xf32, #tpu.memory_space<vmem>>, vector<2x256xf32>
    %cst_147 = arith.constant 0.000000e+00 : f32
    %180 = vector.shape_cast %20 : vector<1x256xi1> to vector<1x256xi1>
    %181 = vector.broadcast %180 : vector<1x256xi1> to vector<2x256xi1>
    %182 = vector.broadcast %cst_147 : f32 to vector<2x256xf32>
    %183 = arith.select %181, %179, %182 : vector<2x256xi1>, vector<2x256xf32>
    %c16_148 = arith.constant 16 : index
    %c0_149 = arith.constant 0 : index
    %184 = vector.load %arg15[%c16_148, %c0_149] : memref<72x256xf32, #tpu.memory_space<vmem>>, vector<2x256xf32>
    tpu.vector_store %arg15[%c16_148, %c0_149], %183 {strides = array<i32>} : memref<72x256xf32, #tpu.memory_space<vmem>>, vector<2x256xf32>,
    %c0_150 = arith.constant 0 : index
    %c0_151 = arith.constant 0 : index
    %185 = vector.load %arg11[%c0_150, %c0_151] : memref<2x18xf32, #tpu.memory_space<vmem>>, vector<2x18xf32>
    %c0_152 = arith.constant 0 : index
    %c0_153 = arith.constant 0 : index
    %186 = vector.load %arg15[%c0_152, %c0_153] : memref<72x256xf32, #tpu.memory_space<vmem>>, vector<18x256xf32>
    %cst_154 = arith.constant dense<0.000000e+00> : vector<2x256xf32>
    %187 = tpu.matmul %185, %186, %cst_154 {dimension_numbers = #tpu.dot_dimension_numbers<[1], [0], [0], [1], [0, 0, 1, 1], [], []>} : vector<2x18xf32>, vector<18x256xf32>, vector<2x256xf32> -> vector<2x256xf32>
    %c0_155 = arith.constant 0 : index
    %c0_156 = arith.constant 0 : index
    %188 = vector.load %arg12[%c0_155, %c0_156] : memref<2x1xf32, #tpu.memory_space<vmem>>, vector<2x1xf32>
    %189 = vector.broadcast %188 : vector<2x1xf32> to vector<2x256xf32>
    %190 = arith.addf %187, %189 : vector<2x256xf32>
    %191 = arith.negf %190 : vector<2x256xf32>
    %192 = math.exp %191 : vector<2x256xf32>
    %cst_157 = arith.constant 1.000000e+00 : f32
    %193 = vector.broadcast %cst_157 : f32 to vector<2x256xf32>
    %194 = arith.addf %193, %192 : vector<2x256xf32>
    %195 = arith.divf %193, %194 : vector<2x256xf32>
    %196 = vector.extract_strided_slice %195 {offsets = [0, 0], sizes = [1, 256], strides = [1, 1]} : vector<2x256xf32> to vector<1x256xf32>
    %197 = vector.broadcast %196 : vector<1x256xf32> to vector<4x256xf32>
    %198 = arith.mulf %26, %197 : vector<4x256xf32>
    %199 = vector.extract_strided_slice %195 {offsets = [1, 0], sizes = [1, 256], strides = [1, 1]} : vector<2x256xf32> to vector<1x256xf32>
    %200 = vector.broadcast %199 : vector<1x256xf32> to vector<4x256xf32>
    %201 = arith.mulf %28, %200 : vector<4x256xf32>
    %202 = arith.addf %198, %201 : vector<4x256xf32>
    %c0_158 = arith.constant 0 : index
    %c0_159 = arith.constant 0 : index
    %c0_160 = arith.constant 0 : index
    %203 = vector.load %arg13[%c0_158, %c0_159, %c0_160] : memref<1x4x256xf32, #tpu.memory_space<vmem>>, vector<1x4x256xf32>
    %204 = vector.shape_cast %203 : vector<1x4x256xf32> to vector<4x256xf32>
    %205 = vector.shape_cast %202 : vector<4x256xf32> to vector<1x4x256xf32>
    tpu.vector_store %arg13[%c0_158, %c0_159, %c0_160], %205 {strides = array<i32>} : memref<1x4x256xf32, #tpu.memory_space<vmem>>, vector<1x4x256xf32>,
    return
  }
  func.func @transform_0(%arg0: i32) -> (i32, i32, i32) {
    %c0_i32 = arith.constant 0 : i32
    %c0_i32_0 = arith.constant 0 : i32
    %c0_i32_1 = arith.constant 0 : i32
    return %arg0, %c0_i32, %c0_i32_0 : i32, i32, i32
  }
  func.func @transform_1(%arg0: i32) -> (i32, i32, i32) {
    %c0_i32 = arith.constant 0 : i32
    %c0_i32_0 = arith.constant 0 : i32
    %c0_i32_1 = arith.constant 0 : i32
    return %arg0, %c0_i32, %c0_i32_0 : i32, i32, i32
  }
  func.func @transform_2(%arg0: i32) -> (i32, i32) {
    %c0_i32 = arith.constant 0 : i32
    %c0_i32_0 = arith.constant 0 : i32
    %c0_i32_1 = arith.constant 0 : i32
    return %c0_i32, %c0_i32_0 : i32, i32
  }
  func.func @transform_3(%arg0: i32) -> (i32, i32) {
    %c0_i32 = arith.constant 0 : i32
    %c0_i32_0 = arith.constant 0 : i32
    %c0_i32_1 = arith.constant 0 : i32
    return %c0_i32, %c0_i32_0 : i32, i32
  }
  func.func @transform_4(%arg0: i32) -> (i32, i32) {
    %c0_i32 = arith.constant 0 : i32
    %c0_i32_0 = arith.constant 0 : i32
    %c0_i32_1 = arith.constant 0 : i32
    return %c0_i32, %c0_i32_0 : i32, i32
  }
  func.func @transform_5(%arg0: i32) -> (i32, i32) {
    %c0_i32 = arith.constant 0 : i32
    %c0_i32_0 = arith.constant 0 : i32
    %c0_i32_1 = arith.constant 0 : i32
    return %c0_i32, %c0_i32_0 : i32, i32
  }
  func.func @transform_6(%arg0: i32) -> (i32, i32) {
    %c0_i32 = arith.constant 0 : i32
    %c0_i32_0 = arith.constant 0 : i32
    %c0_i32_1 = arith.constant 0 : i32
    return %c0_i32, %c0_i32_0 : i32, i32
  }
  func.func @transform_7(%arg0: i32) -> (i32, i32) {
    %c0_i32 = arith.constant 0 : i32
    %c0_i32_0 = arith.constant 0 : i32
    %c0_i32_1 = arith.constant 0 : i32
    return %c0_i32, %c0_i32_0 : i32, i32
  }
  func.func @transform_8(%arg0: i32) -> (i32, i32) {
    %c0_i32 = arith.constant 0 : i32
    %c0_i32_0 = arith.constant 0 : i32
    %c0_i32_1 = arith.constant 0 : i32
    return %c0_i32, %c0_i32_0 : i32, i32
  }
  func.func @transform_9(%arg0: i32) -> (i32, i32) {
    %c0_i32 = arith.constant 0 : i32
    %c0_i32_0 = arith.constant 0 : i32
    %c0_i32_1 = arith.constant 0 : i32
    return %c0_i32, %c0_i32_0 : i32, i32
  }
  func.func @transform_10(%arg0: i32) -> (i32, i32) {
    %c0_i32 = arith.constant 0 : i32
    %c0_i32_0 = arith.constant 0 : i32
    %c0_i32_1 = arith.constant 0 : i32
    return %c0_i32, %c0_i32_0 : i32, i32
  }
  func.func @transform_11(%arg0: i32) -> (i32, i32) {
    %c0_i32 = arith.constant 0 : i32
    %c0_i32_0 = arith.constant 0 : i32
    %c0_i32_1 = arith.constant 0 : i32
    return %c0_i32, %c0_i32_0 : i32, i32
  }
  func.func @transform_12(%arg0: i32) -> (i32, i32, i32) {
    %c0_i32 = arith.constant 0 : i32
    %c0_i32_0 = arith.constant 0 : i32
    %c0_i32_1 = arith.constant 0 : i32
    return %arg0, %c0_i32, %c0_i32_0 : i32, i32, i32
  }
}

</mosaic_0001>

<llo_original>
// kernel: tpu_custom_call.1
$region0: #{tpu_custom_call.1}
  #allocation0 [shape = 'u32[]', space=smem, size = 0x4, offset = 0x4, fixed_abs, tag = 'smem constant byte address 0x4 - core index']
  #allocation1 [shape = 'u32[144,128]{1,0:T(1,128)}', space=vmem, size = 0x12000, scoped, tag = 'internal scratch']
  #allocation2 [shape = 'f32[8,512]{1,0:T(8,128)}', space=vmem, size = 0x4000, scoped, tag = 'scratch operand']
  #allocation3 [shape = 'f32[72,256]{1,0:T(8,128)}', space=vmem, size = 0x12000, scoped, tag = 'scratch operand']
  %s0 = inlined_call_operand.vmem [shape: f32[2,4,256], index: 0, kind: input, shape index: {}]
  %s1 = inlined_call_operand.hbm [shape: f32[2,4,256], index: 1, kind: input, shape index: {}]
  %s2 = inlined_call_operand.vmem [shape: f32[4,72], index: 2, kind: input, shape index: {}]
  %s3 = inlined_call_operand.vmem [shape: f32[4,72], index: 3, kind: input, shape index: {}]
  %s4 = inlined_call_operand.vmem [shape: f32[4,1], index: 4, kind: input, shape index: {}]
  %s5 = inlined_call_operand.vmem [shape: f32[4,1], index: 5, kind: input, shape index: {}]
  %s6 = inlined_call_operand.vmem [shape: f32[2,36], index: 6, kind: input, shape index: {}]
  %s7 = inlined_call_operand.vmem [shape: f32[2,36], index: 7, kind: input, shape index: {}]
  %s8 = inlined_call_operand.vmem [shape: f32[2,1], index: 8, kind: input, shape index: {}]
  %s9 = inlined_call_operand.vmem [shape: f32[2,1], index: 9, kind: input, shape index: {}]
  %s10 = inlined_call_operand.vmem [shape: f32[2,18], index: 10, kind: input, shape index: {}]
  %s11 = inlined_call_operand.vmem [shape: f32[2,1], index: 11, kind: input, shape index: {}]
  %s12 = inlined_call_operand.hbm [shape: f32[2,4,256], index: 12, kind: output, shape index: {}]
  %s13 = sld [smem:[#allocation0]]
  $region85: #{tpu_custom_call.1} parent=0
    _
  %s15 = ssub.s32 1, %s13
  %s16 = scalar_select 0, %s15, %s13
  $region1: #{tpu_custom_call.1} parent=0
    #allocation4 [shape = 'u8[8192]{0}', space=vmem, size = 0x2000, scoped, tag = 'input window, operand 1']
    #allocation5 [shape = 's32[2]{0}', space=sflag, size = 0x8, scoped, tag = 'scoped memory for tpu_custom_call.1']
    #allocation6 [shape = 's32[2]{0}', space=sflag, size = 0x8, scoped, tag = 'scoped memory for tpu_custom_call.1']
    #allocation7 [shape = 'u8[8192]{0}', space=vmem, size = 0x2000, scoped, tag = 'output window, operand 0']
    %17 = vsyncpa [#allocation5], 0
    %s18 = scalar_lea.sflag [#allocation5], 1
    %19 = vsyncpa %s18, 0
    %20 = vsyncpa [#allocation6], 0
    %s21 = scalar_lea.sflag [#allocation6], 1
    %22 = vsyncpa %s21, 0
    loop: start=0, step=1, limit=4
    $region2: #{tpu_custom_call.1} parent=1 // loop_pre_header
      _
    $region3: #{tpu_custom_call.1} parent=1 // loop_header
      %s24 = sphi 0, %s28
      %p25 = scmp.ge.s32.totalorder %s24, 4
      %s34 = sphi 0, %s36
      %s37 = sphi 0, %s34
      %s38 = sphi 0, %s37
      %s54 = sphi 0, %s38
      %s60 = sphi 0, %s62
      %s63 = sphi 0, %s60
      %s64 = sphi 0, %s63
      %s80 = sphi 0, %s64
      %s84 = sphi 0, %s84
      %s86 = sphi 0, %s84
      %s87 = sphi 0, %s86
      %s101 = sphi 0, %s87
      %s105 = sphi 0, %s105
      %s107 = sphi 0, %s105
      %s108 = sphi 0, %s107
      %s122 = sphi 0, %s108
      %s126 = sphi 0, %s126
      %s128 = sphi 0, %s126
      %s129 = sphi 0, %s128
      %s143 = sphi 0, %s129
      %s147 = sphi 0, %s147
      %s149 = sphi 0, %s147
      %s150 = sphi 0, %s149
      %s164 = sphi 0, %s150
      %s168 = sphi 0, %s168
      %s170 = sphi 0, %s168
      %s171 = sphi 0, %s170
      %s185 = sphi 0, %s171
      %s189 = sphi 0, %s189
      %s191 = sphi 0, %s189
      %s192 = sphi 0, %s191
      %s206 = sphi 0, %s192
      %s210 = sphi 0, %s210
      %s212 = sphi 0, %s210
      %s213 = sphi 0, %s212
      %s227 = sphi 0, %s213
      %s231 = sphi 0, %s231
      %s233 = sphi 0, %s231
      %s234 = sphi 0, %s233
      %s248 = sphi 0, %s234
      %s252 = sphi 0, %s252
      %s254 = sphi 0, %s252
      %s255 = sphi 0, %s254
      %s269 = sphi 0, %s255
      %s273 = sphi 0, %s273
      %s275 = sphi 0, %s273
      %s276 = sphi 0, %s275
      %s290 = sphi 0, %s276
      %s296 = sphi 0, %s298
      %s299 = sphi 0, %s296
      %s300 = sphi 0, %s299
      %s316 = sphi 0, %s300
    $region4: #{tpu_custom_call.1} parent=1 // loop_header_branch
      %27 = sbr.rel (%p25) target = $region8
    $region5: #{tpu_custom_call.1} parent=1 // loop_body
      %s29 = ssub.s32 %s24, 1
      %s30 = ssub.s32 %s24, 2
      %s31 = sadd.s32 %s24, 1
      %s32 = ssub.s32 %s24, %s31
      %p33 = scmp.eq.s32.totalorder %s32, 0
      %s35 = sadd.s32 %s34, 1
      %s36 = scalar_select %p33, %s34, %s35
      %p39 = pneg %p33
      %p40 = scmp.eq.s32.totalorder %s24, 1
      %p41 = por %p39, %p40
      %p42 = scmp.ne.s32.totalorder %s34, %s37
      %p43 = scmp.eq.s32.totalorder %s24, 0
      %p44 = por %p42, %p43
      %p45 = scmp.ne.s32.totalorder %s34, %s37
      %p46 = scmp.eq.s32.totalorder %s29, 1
      %p47 = por %p45, %p46
      %p48 = scmp.ne.s32.totalorder %s37, %s38
      %p49 = scmp.eq.s32.totalorder %s29, 0
      %p50 = por %p48, %p49
      %p51 = scmp.ne.s32.totalorder %s37, %s38
      %p52 = scmp.eq.s32.totalorder %s30, 1
      %p53 = por %p51, %p52
      %p55 = scmp.ne.s32.totalorder %s38, %s54
      %p56 = scmp.eq.s32.totalorder %s30, 0
      %p57 = por %p55, %p56
      %s58 = ssub.s32 %s24, %s31
      %p59 = scmp.eq.s32.totalorder %s58, 0
      %s61 = sadd.s32 %s60, 1
      %s62 = scalar_select %p59, %s60, %s61
      %p65 = pneg %p59
      %p66 = scmp.eq.s32.totalorder %s24, 1
      %p67 = por %p65, %p66
      %p68 = scmp.ne.s32.totalorder %s60, %s63
      %p69 = scmp.eq.s32.totalorder %s24, 0
      %p70 = por %p68, %p69
      %p71 = scmp.ne.s32.totalorder %s60, %s63
      %p72 = scmp.eq.s32.totalorder %s29, 1
      %p73 = por %p71, %p72
      %p74 = scmp.ne.s32.totalorder %s63, %s64
      %p75 = scmp.eq.s32.totalorder %s29, 0
      %p76 = por %p74, %p75
      %p77 = scmp.ne.s32.totalorder %s63, %s64
      %p78 = scmp.eq.s32.totalorder %s30, 1
      %p79 = por %p77, %p78
      %p81 = scmp.ne.s32.totalorder %s64, %s80
      %p82 = scmp.eq.s32.totalorder %s30, 0
      %p83 = por %p81, %p82
      %s85 = sadd.s32 %s84, 1
      %p88 = scmp.eq.s32.totalorder %s24, 1
      %p89 = scmp.ne.s32.totalorder %s84, %s86
      %p90 = scmp.eq.s32.totalorder %s24, 0
      %p91 = por %p89, %p90
      %p92 = scmp.ne.s32.totalorder %s84, %s86
      %p93 = scmp.eq.s32.totalorder %s29, 1
      %p94 = por %p92, %p93
      %p95 = scmp.ne.s32.totalorder %s86, %s87
      %p96 = scmp.eq.s32.totalorder %s29, 0
      %p97 = por %p95, %p96
      %p98 = scmp.ne.s32.totalorder %s86, %s87
      %p99 = scmp.eq.s32.totalorder %s30, 1
      %p100 = por %p98, %p99
      %p102 = scmp.ne.s32.totalorder %s87, %s101
      %p103 = scmp.eq.s32.totalorder %s30, 0
      %p104 = por %p102, %p103
      %s106 = sadd.s32 %s105, 1
      %p109 = scmp.eq.s32.totalorder %s24, 1
      %p110 = scmp.ne.s32.totalorder %s105, %s107
      %p111 = scmp.eq.s32.totalorder %s24, 0
      %p112 = por %p110, %p111
      %p113 = scmp.ne.s32.totalorder %s105, %s107
      %p114 = scmp.eq.s32.totalorder %s29, 1
      %p115 = por %p113, %p114
      %p116 = scmp.ne.s32.totalorder %s107, %s108
      %p117 = scmp.eq.s32.totalorder %s29, 0
      %p118 = por %p116, %p117
      %p119 = scmp.ne.s32.totalorder %s107, %s108
      %p120 = scmp.eq.s32.totalorder %s30, 1
      %p121 = por %p119, %p120
      %p123 = scmp.ne.s32.totalorder %s108, %s122
      %p124 = scmp.eq.s32.totalorder %s30, 0
      %p125 = por %p123, %p124
      %s127 = sadd.s32 %s126, 1
      %p130 = scmp.eq.s32.totalorder %s24, 1
      %p131 = scmp.ne.s32.totalorder %s126, %s128
      %p132 = scmp.eq.s32.totalorder %s24, 0
      %p133 = por %p131, %p132
      %p134 = scmp.ne.s32.totalorder %s126, %s128
      %p135 = scmp.eq.s32.totalorder %s29, 1
      %p136 = por %p134, %p135
      %p137 = scmp.ne.s32.totalorder %s128, %s129
      %p138 = scmp.eq.s32.totalorder %s29, 0
      %p139 = por %p137, %p138
      %p140 = scmp.ne.s32.totalorder %s128, %s129
      %p141 = scmp.eq.s32.totalorder %s30, 1
      %p142 = por %p140, %p141
      %p144 = scmp.ne.s32.totalorder %s129, %s143
      %p145 = scmp.eq.s32.totalorder %s30, 0
      %p146 = por %p144, %p145
      %s148 = sadd.s32 %s147, 1
      %p151 = scmp.eq.s32.totalorder %s24, 1
      %p152 = scmp.ne.s32.totalorder %s147, %s149
      %p153 = scmp.eq.s32.totalorder %s24, 0
      %p154 = por %p152, %p153
      %p155 = scmp.ne.s32.totalorder %s147, %s149
      %p156 = scmp.eq.s32.totalorder %s29, 1
      %p157 = por %p155, %p156
      %p158 = scmp.ne.s32.totalorder %s149, %s150
      %p159 = scmp.eq.s32.totalorder %s29, 0
      %p160 = por %p158, %p159
      %p161 = scmp.ne.s32.totalorder %s149, %s150
      %p162 = scmp.eq.s32.totalorder %s30, 1
      %p163 = por %p161, %p162
      %p165 = scmp.ne.s32.totalorder %s150, %s164
      %p166 = scmp.eq.s32.totalorder %s30, 0
      %p167 = por %p165, %p166
      %s169 = sadd.s32 %s168, 1
      %p172 = scmp.eq.s32.totalorder %s24, 1
      %p173 = scmp.ne.s32.totalorder %s168, %s170
      %p174 = scmp.eq.s32.totalorder %s24, 0
      %p175 = por %p173, %p174
      %p176 = scmp.ne.s32.totalorder %s168, %s170
      %p177 = scmp.eq.s32.totalorder %s29, 1
      %p178 = por %p176, %p177
      %p179 = scmp.ne.s32.totalorder %s170, %s171
      %p180 = scmp.eq.s32.totalorder %s29, 0
      %p181 = por %p179, %p180
      %p182 = scmp.ne.s32.totalorder %s170, %s171
      %p183 = scmp.eq.s32.totalorder %s30, 1
      %p184 = por %p182, %p183
      %p186 = scmp.ne.s32.totalorder %s171, %s185
      %p187 = scmp.eq.s32.totalorder %s30, 0
      %p188 = por %p186, %p187
      %s190 = sadd.s32 %s189, 1
      %p193 = scmp.eq.s32.totalorder %s24, 1
      %p194 = scmp.ne.s32.totalorder %s189, %s191
      %p195 = scmp.eq.s32.totalorder %s24, 0
      %p196 = por %p194, %p195
      %p197 = scmp.ne.s32.totalorder %s189, %s191
      %p198 = scmp.eq.s32.totalorder %s29, 1
      %p199 = por %p197, %p198
      %p200 = scmp.ne.s32.totalorder %s191, %s192
      %p201 = scmp.eq.s32.totalorder %s29, 0
      %p202 = por %p200, %p201
      %p203 = scmp.ne.s32.totalorder %s191, %s192
      %p204 = scmp.eq.s32.totalorder %s30, 1
      %p205 = por %p203, %p204
      %p207 = scmp.ne.s32.totalorder %s192, %s206
      %p208 = scmp.eq.s32.totalorder %s30, 0
      %p209 = por %p207, %p208
      %s211 = sadd.s32 %s210, 1
      %p214 = scmp.eq.s32.totalorder %s24, 1
      %p215 = scmp.ne.s32.totalorder %s210, %s212
      %p216 = scmp.eq.s32.totalorder %s24, 0
      %p217 = por %p215, %p216
      %p218 = scmp.ne.s32.totalorder %s210, %s212
      %p219 = scmp.eq.s32.totalorder %s29, 1
      %p220 = por %p218, %p219
      %p221 = scmp.ne.s32.totalorder %s212, %s213
      %p222 = scmp.eq.s32.totalorder %s29, 0
      %p223 = por %p221, %p222
      %p224 = scmp.ne.s32.totalorder %s212, %s213
      %p225 = scmp.eq.s32.totalorder %s30, 1
      %p226 = por %p224, %p225
      %p228 = scmp.ne.s32.totalorder %s213, %s227
      %p229 = scmp.eq.s32.totalorder %s30, 0
      %p230 = por %p228, %p229
      %s232 = sadd.s32 %s231, 1
      %p235 = scmp.eq.s32.totalorder %s24, 1
      %p236 = scmp.ne.s32.totalorder %s231, %s233
      %p237 = scmp.eq.s32.totalorder %s24, 0
      %p238 = por %p236, %p237
      %p239 = scmp.ne.s32.totalorder %s231, %s233
      %p240 = scmp.eq.s32.totalorder %s29, 1
      %p241 = por %p239, %p240
      %p242 = scmp.ne.s32.totalorder %s233, %s234
      %p243 = scmp.eq.s32.totalorder %s29, 0
      %p244 = por %p242, %p243
      %p245 = scmp.ne.s32.totalorder %s233, %s234
      %p246 = scmp.eq.s32.totalorder %s30, 1
      %p247 = por %p245, %p246
      %p249 = scmp.ne.s32.totalorder %s234, %s248
      %p250 = scmp.eq.s32.totalorder %s30, 0
      %p251 = por %p249, %p250
      %s253 = sadd.s32 %s252, 1
      %p256 = scmp.eq.s32.totalorder %s24, 1
      %p257 = scmp.ne.s32.totalorder %s252, %s254
      %p258 = scmp.eq.s32.totalorder %s24, 0
      %p259 = por %p257, %p258
      %p260 = scmp.ne.s32.totalorder %s252, %s254
      %p261 = scmp.eq.s32.totalorder %s29, 1
      %p262 = por %p260, %p261
      %p263 = scmp.ne.s32.totalorder %s254, %s255
      %p264 = scmp.eq.s32.totalorder %s29, 0
      %p265 = por %p263, %p264
      %p266 = scmp.ne.s32.totalorder %s254, %s255
      %p267 = scmp.eq.s32.totalorder %s30, 1
      %p268 = por %p266, %p267
      %p270 = scmp.ne.s32.totalorder %s255, %s269
      %p271 = scmp.eq.s32.totalorder %s30, 0
      %p272 = por %p270, %p271
      %s274 = sadd.s32 %s273, 1
      %p277 = scmp.eq.s32.totalorder %s24, 1
      %p278 = scmp.ne.s32.totalorder %s273, %s275
      %p279 = scmp.eq.s32.totalorder %s24, 0
      %p280 = por %p278, %p279
      %p281 = scmp.ne.s32.totalorder %s273, %s275
      %p282 = scmp.eq.s32.totalorder %s29, 1
      %p283 = por %p281, %p282
      %p284 = scmp.ne.s32.totalorder %s275, %s276
      %p285 = scmp.eq.s32.totalorder %s29, 0
      %p286 = por %p284, %p285
      %p287 = scmp.ne.s32.totalorder %s275, %s276
      %p288 = scmp.eq.s32.totalorder %s30, 1
      %p289 = por %p287, %p288
      %p291 = scmp.ne.s32.totalorder %s276, %s290
      %p292 = scmp.eq.s32.totalorder %s30, 0
      %p293 = por %p291, %p292
      %s294 = ssub.s32 %s24, %s31
      %p295 = scmp.eq.s32.totalorder %s294, 0
      %s297 = sadd.s32 %s296, 1
      %s298 = scalar_select %p295, %s296, %s297
      %p301 = pneg %p295
      %p302 = scmp.eq.s32.totalorder %s24, 1
      %p303 = por %p301, %p302
      %p304 = scmp.ne.s32.totalorder %s296, %s299
      %p305 = scmp.eq.s32.totalorder %s24, 0
      %p306 = por %p304, %p305
      %p307 = scmp.ne.s32.totalorder %s296, %s299
      %p308 = scmp.eq.s32.totalorder %s29, 1
      %p309 = por %p307, %p308
      %p310 = scmp.ne.s32.totalorder %s299, %s300
      %p311 = scmp.eq.s32.totalorder %s29, 0
      %p312 = por %p310, %p311
      %p313 = scmp.ne.s32.totalorder %s299, %s300
      %p314 = scmp.eq.s32.totalorder %s30, 1
      %p315 = por %p313, %p314
      %p317 = scmp.ne.s32.totalorder %s300, %s316
      %p318 = scmp.eq.s32.totalorder %s30, 0
      %p319 = por %p317, %p318
      %p320 = scmp.le.s32.totalorder 1, %s24
      %p321 = scmp.lt.s32.totalorder %s24, 3
      %p322 = pnand %p320, %p321
      %p323 = pneg %p322
      // Predicated region
      $region9: #{tpu_custom_call.1} parent=5 // pred_check
        _
      $region10: #{tpu_custom_call.1} parent=5 // pred_check_branch
        %325 = sbr.rel (%p322) target = $region12
      $region11: #{tpu_custom_call.1} parent=5 // pred_region
        %s326 = ssub.s32 %s24, 1
        // Predicated region
        $region13: #{tpu_custom_call.1} parent=11 // pred_check
          %p327 = pneg %p97
        $region14: #{tpu_custom_call.1} parent=11 // pred_check_branch
          %329 = sbr.rel (%p327) target = $region16
        $region15: #{tpu_custom_call.1} parent=11 // pred_region
          _
        $region16: #{tpu_custom_call.1} parent=11 // pred_fallthru
          _
        // Predicated region
        $region17: #{tpu_custom_call.1} parent=11 // pred_check
          %p330 = pneg %p118
        $region18: #{tpu_custom_call.1} parent=11 // pred_check_branch
          %332 = sbr.rel (%p330) target = $region20
        $region19: #{tpu_custom_call.1} parent=11 // pred_region
          _
        $region20: #{tpu_custom_call.1} parent=11 // pred_fallthru
          _
        // Predicated region
        $region21: #{tpu_custom_call.1} parent=11 // pred_check
          %p333 = pneg %p139
        $region22: #{tpu_custom_call.1} parent=11 // pred_check_branch
          %335 = sbr.rel (%p333) target = $region24
        $region23: #{tpu_custom_call.1} parent=11 // pred_region
          _
        $region24: #{tpu_custom_call.1} parent=11 // pred_fallthru
          _
        // Predicated region
        $region25: #{tpu_custom_call.1} parent=11 // pred_check
          %p336 = pneg %p160
        $region26: #{tpu_custom_call.1} parent=11 // pred_check_branch
          %338 = sbr.rel (%p336) target = $region28
        $region27: #{tpu_custom_call.1} parent=11 // pred_region
          _
        $region28: #{tpu_custom_call.1} parent=11 // pred_fallthru
          _
        // Predicated region
        $region29: #{tpu_custom_call.1} parent=11 // pred_check
          %p339 = pneg %p181
        $region30: #{tpu_custom_call.1} parent=11 // pred_check_branch
          %341 = sbr.rel (%p339) target = $region32
        $region31: #{tpu_custom_call.1} parent=11 // pred_region
          _
        $region32: #{tpu_custom_call.1} parent=11 // pred_fallthru
          _
        // Predicated region
        $region33: #{tpu_custom_call.1} parent=11 // pred_check
          %p342 = pneg %p202
        $region34: #{tpu_custom_call.1} parent=11 // pred_check_branch
          %344 = sbr.rel (%p342) target = $region36
        $region35: #{tpu_custom_call.1} parent=11 // pred_region
          _
        $region36: #{tpu_custom_call.1} parent=11 // pred_fallthru
          _
        // Predicated region
        $region37: #{tpu_custom_call.1} parent=11 // pred_check
          %p345 = pneg %p223
        $region38: #{tpu_custom_call.1} parent=11 // pred_check_branch
          %347 = sbr.rel (%p345) target = $region40
        $region39: #{tpu_custom_call.1} parent=11 // pred_region
          _
        $region40: #{tpu_custom_call.1} parent=11 // pred_fallthru
          _
        // Predicated region
        $region41: #{tpu_custom_call.1} parent=11 // pred_check
          %p348 = pneg %p244
        $region42: #{tpu_custom_call.1} parent=11 // pred_check_branch
          %350 = sbr.rel (%p348) target = $region44
        $region43: #{tpu_custom_call.1} parent=11 // pred_region
          _
        $region44: #{tpu_custom_call.1} parent=11 // pred_fallthru
          _
        // Predicated region
        $region45: #{tpu_custom_call.1} parent=11 // pred_check
          %p351 = pneg %p265
        $region46: #{tpu_custom_call.1} parent=11 // pred_check_branch
          %353 = sbr.rel (%p351) target = $region48
        $region47: #{tpu_custom_call.1} parent=11 // pred_region
          _
        $region48: #{tpu_custom_call.1} parent=11 // pred_fallthru
          _
        // Predicated region
        $region49: #{tpu_custom_call.1} parent=11 // pred_check
          %p354 = pneg %p286
        $region50: #{tpu_custom_call.1} parent=11 // pred_check_branch
          %356 = sbr.rel (%p354) target = $region52
        $region51: #{tpu_custom_call.1} parent=11 // pred_region
          _
        $region52: #{tpu_custom_call.1} parent=11 // pred_fallthru
          _
      $region12: #{tpu_custom_call.1} parent=5 // pred_fallthru
        _
      %p357 = scmp.lt.s32.totalorder %s24, 2
      // Predicated region
      $region53: #{tpu_custom_call.1} parent=5 // pred_check
        %p358 = pneg %p357
      $region54: #{tpu_custom_call.1} parent=5 // pred_check_branch
        %360 = sbr.rel (%p358) target = $region56
      $region55: #{tpu_custom_call.1} parent=5 // pred_region
        // Predicated region
        $region57: #{tpu_custom_call.1} parent=55 // pred_check
          %p361 = pneg %p44
        $region58: #{tpu_custom_call.1} parent=55 // pred_check_branch
          %363 = sbr.rel (%p361) target = $region60
        $region59: #{tpu_custom_call.1} parent=55 // pred_region
          %p364 = scmp.lt.s32.totalorder %s24, 1
          %s365 = scalar_select %p364, %s24, 1
          %s366 = smul.addr %s365, 2
          %s367 = smul.addr %s366, 4
          %s368 = scalar_lea.vmem %s0, %s367
        $region60: #{tpu_custom_call.1} parent=55 // pred_fallthru
          _
        // Predicated region
        $region61: #{tpu_custom_call.1} parent=55 // pred_check
          %p369 = pneg %p70
        $region62: #{tpu_custom_call.1} parent=55 // pred_check_branch
          %371 = sbr.rel (%p369) target = $region64
        $region63: #{tpu_custom_call.1} parent=55 // pred_region
          %s372 = sand.u32 %s60, 1
          %s373 = scalar_lea.sflag [#allocation5], %s372
          %s374 = sand.u32 %s60, 1
          %s375 = smul.addr %s374, 8
          %s376 = scalar_lea.vmem [#allocation4], %s375
          %s378 = ssub.s32 128, 128
          %379 = vsyncadd %s373, %s378
          %s380 = smul.addr %s24, 2
          %s381 = smul.addr %s380, 64
          %s382 = scalar_lea.hbm %s1, %s381
          %s384 = sshll.u32 %s376, 4
          %s385 = int_to_ptr.vmem [resolvable:$true] %s384
          %387 = dma.hbm_to_vmem [thread:$0]  %s382, 128, %s385, %s373
        $region64: #{tpu_custom_call.1} parent=55 // pred_fallthru
          _
      $region56: #{tpu_custom_call.1} parent=5 // pred_fallthru
        _
      %p388 = scmp.le.s32.totalorder 1, %s24
      %p389 = scmp.lt.s32.totalorder %s24, 3
      %p390 = pnand %p388, %p389
      %p391 = pneg %p390
      // Predicated region
      $region65: #{tpu_custom_call.1} parent=5 // pred_check
        _
      $region66: #{tpu_custom_call.1} parent=5 // pred_check_branch
        %393 = sbr.rel (%p390) target = $region68
      $region67: #{tpu_custom_call.1} parent=5 // pred_region
        %s394 = ssub.s32 %s24, 1
        %s395 = sand.u32 %s63, 1
        %s396 = scalar_lea.sflag [#allocation5], %s395
        %s397 = sand.u32 %s63, 1
        %s398 = smul.addr %s397, 8
        %s399 = scalar_lea.vmem [#allocation4], %s398
        // Predicated region
        $region69: #{tpu_custom_call.1} parent=67 // pred_check
          %p400 = pneg %p76
        $region70: #{tpu_custom_call.1} parent=67 // pred_check_branch
          %402 = sbr.rel (%p400) target = $region72
        $region71: #{tpu_custom_call.1} parent=67 // pred_region
          %403 = dma.done %s396, 128
        $region72: #{tpu_custom_call.1} parent=67 // pred_fallthru
          _
        %p404 = scmp.lt.s32.totalorder %s29, 1
        %s405 = scalar_select %p404, %s29, 1
        %s406 = smul.addr %s405, 2
        %s407 = smul.addr %s406, 4
        %s408 = scalar_lea.vmem %s0, %s407
        %p409 = pneg %p50
        %p410 = pneg %p47
        %s411 = sand.u32 %s63, 1
        %s412 = scalar_lea.sflag [#allocation5], %s411
        %s413 = sand.u32 %s63, 1
        %s414 = smul.addr %s413, 8
        %s415 = scalar_lea.vmem [#allocation4], %s414
        %p416 = pneg %p76
        %p417 = pneg %p73
        %p418 = pneg %p97
        %p419 = pneg %p94
        %p420 = pneg %p118
        %p421 = pneg %p115
        %p422 = pneg %p139
        %p423 = pneg %p136
        %p424 = pneg %p160
        %p425 = pneg %p157
        %p426 = pneg %p181
        %p427 = pneg %p178
        %p428 = pneg %p202
        %p429 = pneg %p199
        %p430 = pneg %p223
        %p431 = pneg %p220
        %p432 = pneg %p244
        %p433 = pneg %p241
        %p434 = pneg %p265
        %p435 = pneg %p262
        %p436 = pneg %p286
        %p437 = pneg %p283
        %p438 = pneg %p312
        %p439 = pneg %p309
        %s440 = sand.u32 %s299, 1
        %s441 = scalar_lea.sflag [#allocation6], %s440
        %s442 = sand.u32 %s299, 1
        %s443 = smul.addr %s442, 8
        %s444 = scalar_lea.vmem [#allocation7], %s443
        %p445 = scmp.lt.s32.totalorder %s29, 1
        %s446 = scalar_select %p445, %s29, 1
        %s447 = smul.addr %s446, 2
        %s448 = smul.addr %s447, 4
        %s449 = scalar_lea.vmem %s0, %s448
        %v450 = vlaneseq
        %v451 = vand.u32 %v450, 127
        %v452 = vadd.s32 %v451, 128
        %vm453 = vcmp.lt.s32.totalorder %v451, 0
        %v454 = vsub.s32 0, %v451
        %v455 = vsel %vm453, %v454, %v451
        %v456 = vshrl.u32 %v455, 4
        %v457 = vand.u32 %v455, 15
        %v458 = vsub.s32 0, %v457
        %v459 = vsel %vm453, %v458, %v457
        %vm460 = vcmp.lt.s32.totalorder %v452, 0
        %v461 = vsub.s32 0, %v452
        %v462 = vsel %vm460, %v461, %v452
        %v463 = vshrl.u32 %v462, 4
        %v464 = vand.u32 %v462, 15
        %v465 = vsub.s32 0, %v464
        %v466 = vsel %vm460, %v465, %v464
        %vm467 = vcmp.ne.s32.totalorder %v459, 0
        %vm468 = vcmp.ne.s32.totalorder %v466, 0
        %vm469 = vcmp.lt.s32.totalorder %v459, 0
        %vm470 = vcmp.lt.s32.totalorder %v466, 0
        %vm471 = vmand %vm469, %vm467
        %vm472 = vmand %vm470, %vm468
        %v473 = vadd.s32 %v459, 16
        %v474 = vadd.s32 %v466, 16
        %v475 = vsel %vm471, %v473, %v459
        %v476 = vsel %vm472, %v474, %v466
        %vm477 = vcmp.ge.s32.totalorder %v475, 1
        %vm478 = vcmp.ge.s32.totalorder %v476, 1
        %vm479 = vcmp.le.s32.totalorder %v475, 14
        %vm480 = vcmp.le.s32.totalorder %v476, 14
        %481 = vst [vmem:[#allocation2] sm:$0xff] 0.0
        %482 = vst [vmem:[#allocation2 + $0x18] sm:$0xff] 0.0
        %v483 = vld [vmem:[%s449] sm:$0xff]
        %v484 = vld [vmem:[%s399] sm:$0xff]
        %v486 = vcombine.high %v483, %v483
        %488 = vst [vmem:[#allocation2 + $0x8] sm:$0xf] %v483
        %489 = vst [vmem:[#allocation2 + $0x10] sm:$0xf] %v486
        %v491 = vcombine.low %v484, %v484
        %493 = vst [vmem:[#allocation2 + $0x8] sm:$0xf0] %v491
        %494 = vst [vmem:[#allocation2 + $0x10] sm:$0xf0] %v484
        %v495 = vld [vmem:[#allocation2] sm:$0xff]
        %v496 = vld [vmem:[#allocation2 + $0x8] sm:$0xff]
        %v497 = vld [vmem:[#allocation2 + $0x10] sm:$0xff]
        %v498 = vsel %vm477, 1, 0
        %v499 = vsel %vm478, 1, 0
        %vm500 = vcmp.eq.s32.totalorder %v498, 1
        %vm501 = vcmp.eq.s32.totalorder %v499, 1
        %505 = vrot.lane.b32.xlu0 %v495, 17
        %v506 = vpop.permute.xlu0 %505
        %507 = vrot.lane.b32.xlu0 %v496, 17
        %v508 = vpop.permute.xlu0 %507
        %509 = vrot.lane.b32.xlu0 %v497, 17
        %v510 = vpop.permute.xlu0 %509
        %vm511 = vcmask 138240
        %v512 = vsel %vm511, %v506, %v508
        %v513 = vsel %vm511, %v508, %v510
        %v516 = vsel %vm500, %v512, 0.0
        %v517 = vsel %vm501, %v513, 0.0
        %518 = vst [vmem:[#allocation3] sm:$0xff] %v516
        %519 = vst [vmem:[#allocation3 + $0x8] sm:$0xff] %v517
        %v520 = vld [vmem:[#allocation2] sm:$0xff]
        %v521 = vld [vmem:[#allocation2 + $0x8] sm:$0xff]
        %v522 = vld [vmem:[#allocation2 + $0x10] sm:$0xff]
        %526 = vrot.lane.b32.xlu0 %v520, 16
        %v527 = vpop.permute.xlu0 %526
        %528 = vrot.lane.b32.xlu0 %v521, 16
        %v529 = vpop.permute.xlu0 %528
        %530 = vrot.lane.b32.xlu0 %v522, 16
        %v531 = vpop.permute.xlu0 %530
        %vm532 = vcmask 130048
        %v533 = vsel %vm532, %v527, %v529
        %v534 = vsel %vm532, %v529, %v531
        %537 = vst [vmem:[#allocation3 + $0x10] sm:$0xff] %v533
        %538 = vst [vmem:[#allocation3 + $0x18] sm:$0xff] %v534
        %v539 = vld [vmem:[#allocation2] sm:$0xff]
        %v540 = vld [vmem:[#allocation2 + $0x8] sm:$0xff]
        %v541 = vld [vmem:[#allocation2 + $0x10] sm:$0xff]
        %v542 = vsel %vm479, 1, 0
        %v543 = vsel %vm480, 1, 0
        %vm544 = vcmp.eq.s32.totalorder %v542, 1
        %vm545 = vcmp.eq.s32.totalorder %v543, 1
        %549 = vrot.lane.b32.xlu0 %v539, 15
        %v550 = vpop.permute.xlu0 %549
        %551 = vrot.lane.b32.xlu0 %v540, 15
        %v552 = vpop.permute.xlu0 %551
        %553 = vrot.lane.b32.xlu0 %v541, 15
        %v554 = vpop.permute.xlu0 %553
        %vm555 = vcmask 121856
        %v556 = vsel %vm555, %v550, %v552
        %v557 = vsel %vm555, %v552, %v554
        %v560 = vsel %vm544, %v556, 0.0
        %v561 = vsel %vm545, %v557, 0.0
        %562 = vst [vmem:[#allocation3 + $0x20] sm:$0xff] %v560
        %563 = vst [vmem:[#allocation3 + $0x28] sm:$0xff] %v561
        %v564 = vld [vmem:[#allocation2] sm:$0xff]
        %v565 = vld [vmem:[#allocation2 + $0x8] sm:$0xff]
        %v566 = vld [vmem:[#allocation2 + $0x10] sm:$0xff]
        %570 = vrot.lane.b32.xlu0 %v564, 1
        %v571 = vpop.permute.xlu0 %570
        %572 = vrot.lane.b32.xlu0 %v565, 1
        %v573 = vpop.permute.xlu0 %572
        %574 = vrot.lane.b32.xlu0 %v566, 1
        %v575 = vpop.permute.xlu0 %574
        %vm576 = vcmask 7168
        %v577 = vsel %vm576, %v571, %v573
        %v578 = vsel %vm576, %v573, %v575
        %v581 = vsel %vm500, %v577, 0.0
        %v582 = vsel %vm501, %v578, 0.0
        %583 = vst [vmem:[#allocation3 + $0x30] sm:$0xff] %v581
        %584 = vst [vmem:[#allocation3 + $0x38] sm:$0xff] %v582
        %v585 = vld [vmem:[#allocation2 + $0x8] sm:$0xff]
        %v586 = vld [vmem:[#allocation2 + $0x10] sm:$0xff]
        %587 = vst [vmem:[#allocation3 + $0x40] sm:$0xff] %v585
        %588 = vst [vmem:[#allocation3 + $0x48] sm:$0xff] %v586
        %v589 = vld [vmem:[#allocation2 + $0x8] sm:$0xff]
        %v590 = vld [vmem:[#allocation2 + $0x10] sm:$0xff]
        %v591 = vld [vmem:[#allocation2 + $0x18] sm:$0xff]
        %595 = vrot.lane.b32.xlu0 %v589, 127
        %v596 = vpop.permute.xlu0 %595
        %597 = vrot.lane.b32.xlu0 %v590, 127
        %v598 = vpop.permute.xlu0 %597
        %599 = vrot.lane.b32.xlu0 %v591, 127
        %v600 = vpop.permute.xlu0 %599
        %vm601 = vcmask 1039360
        %v602 = vsel %vm601, %v596, %v598
        %v603 = vsel %vm601, %v598, %v600
        %v606 = vsel %vm544, %v602, 0.0
        %v607 = vsel %vm545, %v603, 0.0
        %608 = vst [vmem:[#allocation3 + $0x50] sm:$0xff] %v606
        %609 = vst [vmem:[#allocation3 + $0x58] sm:$0xff] %v607
        %v610 = vld [vmem:[#allocation2 + $0x8] sm:$0xff]
        %v611 = vld [vmem:[#allocation2 + $0x10] sm:$0xff]
        %v612 = vld [vmem:[#allocation2 + $0x18] sm:$0xff]
        %616 = vrot.lane.b32.xlu0 %v610, 113
        %v617 = vpop.permute.xlu0 %616
        %618 = vrot.lane.b32.xlu0 %v611, 113
        %v619 = vpop.permute.xlu0 %618
        %620 = vrot.lane.b32.xlu0 %v612, 113
        %v621 = vpop.permute.xlu0 %620
        %vm622 = vcmask 924672
        %v623 = vsel %vm622, %v617, %v619
        %v624 = vsel %vm622, %v619, %v621
        %v627 = vsel %vm500, %v623, 0.0
        %v628 = vsel %vm501, %v624, 0.0
        %629 = vst [vmem:[#allocation3 + $0x60] sm:$0xff] %v627
        %630 = vst [vmem:[#allocation3 + $0x68] sm:$0xff] %v628
        %v631 = vld [vmem:[#allocation2 + $0x8] sm:$0xff]
        %v632 = vld [vmem:[#allocation2 + $0x10] sm:$0xff]
        %v633 = vld [vmem:[#allocation2 + $0x18] sm:$0xff]
        %637 = vrot.lane.b32.xlu0 %v631, 112
        %v638 = vpop.permute.xlu0 %637
        %639 = vrot.lane.b32.xlu0 %v632, 112
        %v640 = vpop.permute.xlu0 %639
        %641 = vrot.lane.b32.xlu0 %v633, 112
        %v642 = vpop.permute.xlu0 %641
        %vm643 = vcmask 916480
        %v644 = vsel %vm643, %v638, %v640
        %v645 = vsel %vm643, %v640, %v642
        %648 = vst [vmem:[#allocation3 + $0x70] sm:$0xff] %v644
        %649 = vst [vmem:[#allocation3 + $0x78] sm:$0xff] %v645
        %v650 = vld [vmem:[#allocation2 + $0x8] sm:$0xff]
        %v651 = vld [vmem:[#allocation2 + $0x10] sm:$0xff]
        %v652 = vld [vmem:[#allocation2 + $0x18] sm:$0xff]
        %656 = vrot.lane.b32.xlu0 %v650, 111
        %v657 = vpop.permute.xlu0 %656
        %658 = vrot.lane.b32.xlu0 %v651, 111
        %v659 = vpop.permute.xlu0 %658
        %660 = vrot.lane.b32.xlu0 %v652, 111
        %v661 = vpop.permute.xlu0 %660
        %vm662 = vcmask 908288
        %v663 = vsel %vm662, %v657, %v659
        %v664 = vsel %vm662, %v659, %v661
        %v667 = vsel %vm544, %v663, 0.0
        %v668 = vsel %vm545, %v664, 0.0
        %669 = vst [vmem:[#allocation3 + $0x80] sm:$0xff] %v667
        %670 = vst [vmem:[#allocation3 + $0x88] sm:$0xff] %v668
        %v671 = vld [vmem:[%s2] sm:$0xf]
        %v672 = vld [vmem:[#allocation3] sm:$0xff]
        %v673 = vld [vmem:[#allocation3 + $0x8] sm:$0xff]
        %v674 = vld [vmem:[#allocation3 + $0x10] sm:$0xff]
        %v675 = vld [vmem:[#allocation3 + $0x18] sm:$0xff]
        %v676 = vld [vmem:[#allocation3 + $0x20] sm:$0xff]
        %v677 = vld [vmem:[#allocation3 + $0x28] sm:$0xff]
        %v678 = vld [vmem:[#allocation3 + $0x30] sm:$0xff]
        %v679 = vld [vmem:[#allocation3 + $0x38] sm:$0xff]
        %v680 = vld [vmem:[#allocation3 + $0x40] sm:$0xff]
        %v681 = vld [vmem:[#allocation3 + $0x48] sm:$0xff]
        %v682 = vld [vmem:[#allocation3 + $0x50] sm:$0xff]
        %v683 = vld [vmem:[#allocation3 + $0x58] sm:$0xff]
        %v684 = vld [vmem:[#allocation3 + $0x60] sm:$0xff]
        %v685 = vld [vmem:[#allocation3 + $0x68] sm:$0xff]
        %v686 = vld [vmem:[#allocation3 + $0x70] sm:$0xff]
        %v687 = vld [vmem:[#allocation3 + $0x78] sm:$0xff]
        %v688 = vld [vmem:[#allocation3 + $0x80] sm:$0xff]
        %v689 = vld [vmem:[#allocation3 + $0x88] sm:$0xff]
        %v690 = vld [vmem:[%s4] sm:$0xf]
        %692 = vset.pattern.permute.xlu0 0
        %693 = vperm.xlu0 %692, %v690
        %v694 = vpop.permute.xlu0 %693
        %vm696 = vcmask 588800
        %v698 = vsel %vm696, %v671, 0
        %700 = vmatprep.subr.mxu0 %v673
        %701 = vmatpush1.msra.mxu0 %v672
        %702 = vmatprep.subr.mxu0 %v675
        %703 = vmatpush1.msra.mxu0 %v674
        %704 = vmatprep.subr.mxu0 %v677
        %705 = vmatpush1.msra.mxu0 %v676
        %706 = vmatprep.subr.mxu0 %v679
        %707 = vmatpush1.msra.mxu0 %v678
        %708 = vmatprep.subr.mxu0 %v681
        %709 = vmatpush1.msra.mxu0 %v680
        %710 = vmatprep.subr.mxu0 %v683
        %711 = vmatpush1.msra.mxu0 %v682
        %712 = vmatprep.subr.mxu0 %v685
        %713 = vmatpush1.msra.mxu0 %v684
        %714 = vmatprep.subr.mxu0 %v687
        %715 = vmatpush1.msra.mxu0 %v686
        %716 = vmatprep.subr.mxu0 %v689
        %717 = vmatpush1.msra.mxu0 %v688
        %718 = vmatprep.subr.mxu0 0.0
        %719 = vmatpush1.msra.mxu0 0.0
        %720 = vmatprep.subr.mxu0 0.0
        %721 = vmatpush1.msra.mxu0 0.0
        %722 = vmatprep.subr.mxu0 0.0
        %723 = vmatpush1.msra.mxu0 0.0
        %724 = vmatprep.subr.mxu0 0.0
        %725 = vmatpush1.msra.mxu0 0.0
        %726 = vmatprep.subr.mxu0 0.0
        %727 = vmatpush1.msra.mxu0 0.0
        %728 = vmatprep.subr.mxu0 0.0
        %729 = vmatpush1.msra.mxu0 0.0
        %730 = vmatprep.subr.mxu0 0.0
        %731 = vmatpush1.msra.mxu0 0.0
        %732 = vmatprep.subr.mxu0 0.0
        %733 = vmatpush1.msra.mxu0 0.0
        %734 = vmatprep.subr.mxu0 0.0
        %735 = vmatpush1.msra.mxu0 0.0
        %736 = vmatprep.subr.mxu0 0.0
        %737 = vmatpush1.msra.mxu0 0.0
        %738 = vmatprep.subr.mxu0 0.0
        %739 = vmatpush1.msra.mxu0 0.0
        %740 = vmatprep.subr.mxu0 0.0
        %741 = vmatpush1.msra.mxu0 0.0
        %742 = vmatprep.subr.mxu0 0.0
        %743 = vmatpush1.msra.mxu0 0.0
        %744 = vmatprep.subr.mxu0 0.0
        %745 = vmatpush1.msra.mxu0 0.0
        %746 = vmatprep.subr.mxu0 0.0
        %747 = vmatpush1.msra.mxu0 0.0
        %748 = vmatprep.subr.mxu0 0.0
        %749 = vmatpush1.msra.mxu0 0.0
        %750 = vmatprep.subr.mxu0 0.0
        %751 = vmatpush1.msra.mxu0 0.0
        %752 = vmatprep.subr.mxu0 0.0
        %753 = vmatpush1.msra.mxu0 0.0
        %754 = vmatprep.subr.mxu0 0.0
        %755 = vmatpush1.msra.mxu0 0.0
        %756 = vmatprep.subr.mxu0 0.0
        %757 = vmatpush1.msra.mxu0 0.0
        %758 = vmatprep.subr.mxu0 0.0
        %759 = vmatpush1.msra.mxu0 0.0
        %760 = vmatprep.subr.mxu0 0.0
        %761 = vmatpush1.msra.mxu0 0.0
        %762 = vmatprep.subr.mxu0 0.0
        %763 = vmatpush1.msra.mxu0 0.0
        %764 = vmatprep.mubr.f32.mxu0 0.0
        %765 = vmatmul.mubr.f32.gmra.mrb[0].mxu0 %v698
        %v766 = vpop.f32.mrb[0].mxu0
        %v767 = vadd.f32 %v694, %v766
        %v768 = vpop.f32.mrb[0].mxu0
        %v769 = vadd.f32 %v694, %v768
        %770 = vdwg.mxu0
        %v771 = vld [vmem:[%s3] sm:$0xf]
        %v772 = vld [vmem:[%s5] sm:$0xf]
        %774 = vset.pattern.permute.xlu0 0
        %775 = vperm.xlu0 %774, %v772
        %v776 = vpop.permute.xlu0 %775
        %v779 = vsel %vm696, %v771, 0
        %781 = vmatprep.subr.mxu0 %v673
        %782 = vmatpush1.msra.mxu0 %v672
        %783 = vmatprep.subr.mxu0 %v675
        %784 = vmatpush1.msra.mxu0 %v674
        %785 = vmatprep.subr.mxu0 %v677
        %786 = vmatpush1.msra.mxu0 %v676
        %787 = vmatprep.subr.mxu0 %v679
        %788 = vmatpush1.msra.mxu0 %v678
        %789 = vmatprep.subr.mxu0 %v681
        %790 = vmatpush1.msra.mxu0 %v680
        %791 = vmatprep.subr.mxu0 %v683
        %792 = vmatpush1.msra.mxu0 %v682
        %793 = vmatprep.subr.mxu0 %v685
        %794 = vmatpush1.msra.mxu0 %v684
        %795 = vmatprep.subr.mxu0 %v687
        %796 = vmatpush1.msra.mxu0 %v686
        %797 = vmatprep.subr.mxu0 %v689
        %798 = vmatpush1.msra.mxu0 %v688
        %799 = vmatprep.subr.mxu0 0.0
        %800 = vmatpush1.msra.mxu0 0.0
        %801 = vmatprep.subr.mxu0 0.0
        %802 = vmatpush1.msra.mxu0 0.0
        %803 = vmatprep.subr.mxu0 0.0
        %804 = vmatpush1.msra.mxu0 0.0
        %805 = vmatprep.subr.mxu0 0.0
        %806 = vmatpush1.msra.mxu0 0.0
        %807 = vmatprep.subr.mxu0 0.0
        %808 = vmatpush1.msra.mxu0 0.0
        %809 = vmatprep.subr.mxu0 0.0
        %810 = vmatpush1.msra.mxu0 0.0
        %811 = vmatprep.subr.mxu0 0.0
        %812 = vmatpush1.msra.mxu0 0.0
        %813 = vmatprep.subr.mxu0 0.0
        %814 = vmatpush1.msra.mxu0 0.0
        %815 = vmatprep.subr.mxu0 0.0
        %816 = vmatpush1.msra.mxu0 0.0
        %817 = vmatprep.subr.mxu0 0.0
        %818 = vmatpush1.msra.mxu0 0.0
        %819 = vmatprep.subr.mxu0 0.0
        %820 = vmatpush1.msra.mxu0 0.0
        %821 = vmatprep.subr.mxu0 0.0
        %822 = vmatpush1.msra.mxu0 0.0
        %823 = vmatprep.subr.mxu0 0.0
        %824 = vmatpush1.msra.mxu0 0.0
        %825 = vmatprep.subr.mxu0 0.0
        %826 = vmatpush1.msra.mxu0 0.0
        %827 = vmatprep.subr.mxu0 0.0
        %828 = vmatpush1.msra.mxu0 0.0
        %829 = vmatprep.subr.mxu0 0.0
        %830 = vmatpush1.msra.mxu0 0.0
        %831 = vmatprep.subr.mxu0 0.0
        %832 = vmatpush1.msra.mxu0 0.0
        %833 = vmatprep.subr.mxu0 0.0
        %834 = vmatpush1.msra.mxu0 0.0
        %835 = vmatprep.subr.mxu0 0.0
        %836 = vmatpush1.msra.mxu0 0.0
        %837 = vmatprep.subr.mxu0 0.0
        %838 = vmatpush1.msra.mxu0 0.0
        %839 = vmatprep.subr.mxu0 0.0
        %840 = vmatpush1.msra.mxu0 0.0
        %841 = vmatprep.subr.mxu0 0.0
        %842 = vmatpush1.msra.mxu0 0.0
        %843 = vmatprep.subr.mxu0 0.0
        %844 = vmatpush1.msra.mxu0 0.0
        %845 = vmatprep.mubr.f32.mxu0 0.0
        %846 = vmatmul.mubr.f32.gmra.mrb[0].mxu0 %v779
        %v847 = vpop.f32.mrb[0].mxu0
        %v848 = vadd.f32 %v776, %v847
        %v849 = vpop.f32.mrb[0].mxu0
        %v850 = vadd.f32 %v776, %v849
        %851 = vdwg.mxu0
        %v852 = vmul.f32 %v767, %v848
        %v853 = vmul.f32 %v769, %v850
        %854 = vst [vmem:[#allocation2 + $0x8] sm:$0xf] %v852
        %855 = vst [vmem:[#allocation2 + $0x10] sm:$0xf] %v853
        %v856 = vld [vmem:[#allocation2] sm:$0xf]
        %v857 = vld [vmem:[#allocation2 + $0x8] sm:$0xf]
        %v858 = vld [vmem:[#allocation2 + $0x10] sm:$0xf]
        %862 = vrot.lane.b32.xlu0 %v856, 17
        %v863 = vpop.permute.xlu0 %862
        %864 = vrot.lane.b32.xlu0 %v857, 17
        %v865 = vpop.permute.xlu0 %864
        %866 = vrot.lane.b32.xlu0 %v858, 17
        %v867 = vpop.permute.xlu0 %866
        %v868 = vsel %vm511, %v863, %v865
        %v869 = vsel %vm511, %v865, %v867
        %v872 = vsel %vm500, %v868, 0.0
        %v873 = vsel %vm501, %v869, 0.0
        %874 = vst [vmem:[#allocation3] sm:$0xf] %v872
        %875 = vst [vmem:[#allocation3 + $0x8] sm:$0xf] %v873
        %v876 = vld [vmem:[#allocation2] sm:$0xf]
        %v877 = vld [vmem:[#allocation2 + $0x8] sm:$0xf]
        %v878 = vld [vmem:[#allocation2 + $0x10] sm:$0xf]
        %v882 = vrot.slane %v876, 4
        %v883 = vrot.slane %v877, 4
        %v884 = vrot.slane %v878, 4
        %885 = vrot.lane.b32.xlu0 %v882, 16
        %v886 = vpop.permute.xlu0 %885
        %887 = vrot.lane.b32.xlu0 %v883, 16
        %v888 = vpop.permute.xlu0 %887
        %889 = vrot.lane.b32.xlu0 %v884, 16
        %v890 = vpop.permute.xlu0 %889
        %v891 = vsel %vm532, %v886, %v888
        %v892 = vsel %vm532, %v888, %v890
        %895 = vst [vmem:[#allocation3] sm:$0xf0] %v891
        %896 = vst [vmem:[#allocation3 + $0x8] sm:$0xf0] %v892
        %v897 = vld [vmem:[#allocation2] sm:$0xf]
        %v898 = vld [vmem:[#allocation2 + $0x8] sm:$0xf]
        %v899 = vld [vmem:[#allocation2 + $0x10] sm:$0xf]
        %903 = vrot.lane.b32.xlu0 %v897, 15
        %v904 = vpop.permute.xlu0 %903
        %905 = vrot.lane.b32.xlu0 %v898, 15
        %v906 = vpop.permute.xlu0 %905
        %907 = vrot.lane.b32.xlu0 %v899, 15
        %v908 = vpop.permute.xlu0 %907
        %v909 = vsel %vm555, %v904, %v906
        %v910 = vsel %vm555, %v906, %v908
        %v913 = vsel %vm544, %v909, 0.0
        %v914 = vsel %vm545, %v910, 0.0
        %915 = vst [vmem:[#allocation3 + $0x10] sm:$0xf] %v913
        %916 = vst [vmem:[#allocation3 + $0x18] sm:$0xf] %v914
        %v917 = vld [vmem:[#allocation2] sm:$0xf]
        %v918 = vld [vmem:[#allocation2 + $0x8] sm:$0xf]
        %v919 = vld [vmem:[#allocation2 + $0x10] sm:$0xf]
        %923 = vrot.lane.b32.xlu0 %v917, 1
        %v924 = vpop.permute.xlu0 %923
        %925 = vrot.lane.b32.xlu0 %v918, 1
        %v926 = vpop.permute.xlu0 %925
        %927 = vrot.lane.b32.xlu0 %v919, 1
        %v928 = vpop.permute.xlu0 %927
        %v929 = vsel %vm576, %v924, %v926
        %v930 = vsel %vm576, %v926, %v928
        %v933 = vsel %vm500, %v929, 0.0
        %v934 = vsel %vm501, %v930, 0.0
        %v937 = vrot.slane %v933, 4
        %v938 = vrot.slane %v934, 4
        %941 = vst [vmem:[#allocation3 + $0x10] sm:$0xf0] %v937
        %942 = vst [vmem:[#allocation3 + $0x18] sm:$0xf0] %v938
        %v943 = vld [vmem:[#allocation2 + $0x8] sm:$0xf]
        %v944 = vld [vmem:[#allocation2 + $0x10] sm:$0xf]
        %945 = vst [vmem:[#allocation3 + $0x20] sm:$0xf] %v943
        %946 = vst [vmem:[#allocation3 + $0x28] sm:$0xf] %v944
        %v947 = vld [vmem:[#allocation2 + $0x8] sm:$0xf]
        %v948 = vld [vmem:[#allocation2 + $0x10] sm:$0xf]
        %v949 = vld [vmem:[#allocation2 + $0x18] sm:$0xf]
        %953 = vrot.lane.b32.xlu0 %v947, 127
        %v954 = vpop.permute.xlu0 %953
        %955 = vrot.lane.b32.xlu0 %v948, 127
        %v956 = vpop.permute.xlu0 %955
        %957 = vrot.lane.b32.xlu0 %v949, 127
        %v958 = vpop.permute.xlu0 %957
        %v959 = vsel %vm601, %v954, %v956
        %v960 = vsel %vm601, %v956, %v958
        %v963 = vsel %vm544, %v959, 0.0
        %v964 = vsel %vm545, %v960, 0.0
        %v967 = vrot.slane %v963, 4
        %v968 = vrot.slane %v964, 4
        %971 = vst [vmem:[#allocation3 + $0x20] sm:$0xf0] %v967
        %972 = vst [vmem:[#allocation3 + $0x28] sm:$0xf0] %v968
        %v973 = vld [vmem:[#allocation2 + $0x8] sm:$0xf]
        %v974 = vld [vmem:[#allocation2 + $0x10] sm:$0xf]
        %v975 = vld [vmem:[#allocation2 + $0x18] sm:$0xf]
        %979 = vrot.lane.b32.xlu0 %v973, 113
        %v980 = vpop.permute.xlu0 %979
        %981 = vrot.lane.b32.xlu0 %v974, 113
        %v982 = vpop.permute.xlu0 %981
        %983 = vrot.lane.b32.xlu0 %v975, 113
        %v984 = vpop.permute.xlu0 %983
        %v985 = vsel %vm622, %v980, %v982
        %v986 = vsel %vm622, %v982, %v984
        %v989 = vsel %vm500, %v985, 0.0
        %v990 = vsel %vm501, %v986, 0.0
        %991 = vst [vmem:[#allocation3 + $0x30] sm:$0xf] %v989
        %992 = vst [vmem:[#allocation3 + $0x38] sm:$0xf] %v990
        %v993 = vld [vmem:[#allocation2 + $0x8] sm:$0xf]
        %v994 = vld [vmem:[#allocation2 + $0x10] sm:$0xf]
        %v995 = vld [vmem:[#allocation2 + $0x18] sm:$0xf]
        %v999 = vrot.slane %v993, 4
        %v1000 = vrot.slane %v994, 4
        %v1001 = vrot.slane %v995, 4
        %1002 = vrot.lane.b32.xlu0 %v999, 112
        %v1003 = vpop.permute.xlu0 %1002
        %1004 = vrot.lane.b32.xlu0 %v1000, 112
        %v1005 = vpop.permute.xlu0 %1004
        %1006 = vrot.lane.b32.xlu0 %v1001, 112
        %v1007 = vpop.permute.xlu0 %1006
        %v1008 = vsel %vm643, %v1003, %v1005
        %v1009 = vsel %vm643, %v1005, %v1007
        %1012 = vst [vmem:[#allocation3 + $0x30] sm:$0xf0] %v1008
        %1013 = vst [vmem:[#allocation3 + $0x38] sm:$0xf0] %v1009
        %v1014 = vld [vmem:[#allocation2 + $0x8] sm:$0xf]
        %v1015 = vld [vmem:[#allocation2 + $0x10] sm:$0xf]
        %v1016 = vld [vmem:[#allocation2 + $0x18] sm:$0xf]
        %1020 = vrot.lane.b32.xlu0 %v1014, 111
        %v1021 = vpop.permute.xlu0 %1020
        %1022 = vrot.lane.b32.xlu0 %v1015, 111
        %v1023 = vpop.permute.xlu0 %1022
        %1024 = vrot.lane.b32.xlu0 %v1016, 111
        %v1025 = vpop.permute.xlu0 %1024
        %v1026 = vsel %vm662, %v1021, %v1023
        %v1027 = vsel %vm662, %v1023, %v1025
        %v1030 = vsel %vm544, %v1026, 0.0
        %v1031 = vsel %vm545, %v1027, 0.0
        %1032 = vst [vmem:[#allocation3 + $0x40] sm:$0xf] %v1030
        %1033 = vst [vmem:[#allocation3 + $0x48] sm:$0xf] %v1031
        %v1034 = vld [vmem:[%s6] sm:$0x3]
        %v1035 = vld [vmem:[#allocation3] sm:$0xff]
        %v1036 = vld [vmem:[#allocation3 + $0x8] sm:$0xff]
        %v1037 = vld [vmem:[#allocation3 + $0x10] sm:$0xff]
        %v1038 = vld [vmem:[#allocation3 + $0x18] sm:$0xff]
        %v1039 = vld [vmem:[#allocation3 + $0x20] sm:$0xff]
        %v1040 = vld [vmem:[#allocation3 + $0x28] sm:$0xff]
        %v1041 = vld [vmem:[#allocation3 + $0x30] sm:$0xff]
        %v1042 = vld [vmem:[#allocation3 + $0x38] sm:$0xff]
        %v1043 = vld [vmem:[#allocation3 + $0x40] sm:$0xf]
        %v1044 = vld [vmem:[#allocation3 + $0x48] sm:$0xf]
        %v1045 = vld [vmem:[%s8] sm:$0x3]
        %1047 = vset.pattern.permute.xlu0 0
        %1048 = vperm.xlu0 %1047, %v1045
        %v1049 = vpop.permute.xlu0 %1048
        %vm1051 = vcmask 293888
        %v1053 = vsel %vm1051, %v1034, 0
        %vm1055 = vcmask 1043456
        %v1057 = vsel %vm1055, %v1043, 0
        %v1060 = vsel %vm1055, %v1044, 0
        %1062 = vmatprep.subr.mxu0 %v1036
        %1063 = vmatpush1.msra.mxu0 %v1035
        %1064 = vmatprep.subr.mxu0 %v1038
        %1065 = vmatpush1.msra.mxu0 %v1037
        %1066 = vmatprep.subr.mxu0 %v1040
        %1067 = vmatpush1.msra.mxu0 %v1039
        %1068 = vmatprep.subr.mxu0 %v1042
        %1069 = vmatpush1.msra.mxu0 %v1041
        %1070 = vmatprep.subr.mxu0 %v1060
        %1071 = vmatpush1.msra.mxu0 %v1057
        %1072 = vmatprep.subr.mxu0 0.0
        %1073 = vmatpush1.msra.mxu0 0.0
        %1074 = vmatprep.subr.mxu0 0.0
        %1075 = vmatpush1.msra.mxu0 0.0
        %1076 = vmatprep.subr.mxu0 0.0
        %1077 = vmatpush1.msra.mxu0 0.0
        %1078 = vmatprep.subr.mxu0 0.0
        %1079 = vmatpush1.msra.mxu0 0.0
        %1080 = vmatprep.subr.mxu0 0.0
        %1081 = vmatpush1.msra.mxu0 0.0
        %1082 = vmatprep.subr.mxu0 0.0
        %1083 = vmatpush1.msra.mxu0 0.0
        %1084 = vmatprep.subr.mxu0 0.0
        %1085 = vmatpush1.msra.mxu0 0.0
        %1086 = vmatprep.subr.mxu0 0.0
        %1087 = vmatpush1.msra.mxu0 0.0
        %1088 = vmatprep.subr.mxu0 0.0
        %1089 = vmatpush1.msra.mxu0 0.0
        %1090 = vmatprep.subr.mxu0 0.0
        %1091 = vmatpush1.msra.mxu0 0.0
        %1092 = vmatprep.subr.mxu0 0.0
        %1093 = vmatpush1.msra.mxu0 0.0
        %1094 = vmatprep.subr.mxu0 0.0
        %1095 = vmatpush1.msra.mxu0 0.0
        %1096 = vmatprep.subr.mxu0 0.0
        %1097 = vmatpush1.msra.mxu0 0.0
        %1098 = vmatprep.subr.mxu0 0.0
        %1099 = vmatpush1.msra.mxu0 0.0
        %1100 = vmatprep.subr.mxu0 0.0
        %1101 = vmatpush1.msra.mxu0 0.0
        %1102 = vmatprep.subr.mxu0 0.0
        %1103 = vmatpush1.msra.mxu0 0.0
        %1104 = vmatprep.subr.mxu0 0.0
        %1105 = vmatpush1.msra.mxu0 0.0
        %1106 = vmatprep.subr.mxu0 0.0
        %1107 = vmatpush1.msra.mxu0 0.0
        %1108 = vmatprep.subr.mxu0 0.0
        %1109 = vmatpush1.msra.mxu0 0.0
        %1110 = vmatprep.subr.mxu0 0.0
        %1111 = vmatpush1.msra.mxu0 0.0
        %1112 = vmatprep.subr.mxu0 0.0
        %1113 = vmatpush1.msra.mxu0 0.0
        %1114 = vmatprep.subr.mxu0 0.0
        %1115 = vmatpush1.msra.mxu0 0.0
        %1116 = vmatprep.subr.mxu0 0.0
        %1117 = vmatpush1.msra.mxu0 0.0
        %1118 = vmatprep.subr.mxu0 0.0
        %1119 = vmatpush1.msra.mxu0 0.0
        %1120 = vmatprep.subr.mxu0 0.0
        %1121 = vmatpush1.msra.mxu0 0.0
        %1122 = vmatprep.subr.mxu0 0.0
        %1123 = vmatpush1.msra.mxu0 0.0
        %1124 = vmatprep.subr.mxu0 0.0
        %1125 = vmatpush1.msra.mxu0 0.0
        %1126 = vmatprep.mubr.f32.mxu0 0.0
        %1127 = vmatmul.mubr.f32.gmra.mrb[0].mxu0 %v1053
        %v1128 = vpop.f32.mrb[0].mxu0
        %v1129 = vadd.f32 %v1049, %v1128
        %v1130 = vpop.f32.mrb[0].mxu0
        %v1131 = vadd.f32 %v1049, %v1130
        %1132 = vdwg.mxu0
        %v1133 = vld [vmem:[%s7] sm:$0x3]
        %v1134 = vld [vmem:[%s9] sm:$0x3]
        %1136 = vset.pattern.permute.xlu0 0
        %1137 = vperm.xlu0 %1136, %v1134
        %v1138 = vpop.permute.xlu0 %1137
        %v1141 = vsel %vm1051, %v1133, 0
        %1143 = vmatprep.subr.mxu0 %v1036
        %1144 = vmatpush1.msra.mxu0 %v1035
        %1145 = vmatprep.subr.mxu0 %v1038
        %1146 = vmatpush1.msra.mxu0 %v1037
        %1147 = vmatprep.subr.mxu0 %v1040
        %1148 = vmatpush1.msra.mxu0 %v1039
        %1149 = vmatprep.subr.mxu0 %v1042
        %1150 = vmatpush1.msra.mxu0 %v1041
        %1151 = vmatprep.subr.mxu0 %v1060
        %1152 = vmatpush1.msra.mxu0 %v1057
        %1153 = vmatprep.subr.mxu0 0.0
        %1154 = vmatpush1.msra.mxu0 0.0
        %1155 = vmatprep.subr.mxu0 0.0
        %1156 = vmatpush1.msra.mxu0 0.0
        %1157 = vmatprep.subr.mxu0 0.0
        %1158 = vmatpush1.msra.mxu0 0.0
        %1159 = vmatprep.subr.mxu0 0.0
        %1160 = vmatpush1.msra.mxu0 0.0
        %1161 = vmatprep.subr.mxu0 0.0
        %1162 = vmatpush1.msra.mxu0 0.0
        %1163 = vmatprep.subr.mxu0 0.0
        %1164 = vmatpush1.msra.mxu0 0.0
        %1165 = vmatprep.subr.mxu0 0.0
        %1166 = vmatpush1.msra.mxu0 0.0
        %1167 = vmatprep.subr.mxu0 0.0
        %1168 = vmatpush1.msra.mxu0 0.0
        %1169 = vmatprep.subr.mxu0 0.0
        %1170 = vmatpush1.msra.mxu0 0.0
        %1171 = vmatprep.subr.mxu0 0.0
        %1172 = vmatpush1.msra.mxu0 0.0
        %1173 = vmatprep.subr.mxu0 0.0
        %1174 = vmatpush1.msra.mxu0 0.0
        %1175 = vmatprep.subr.mxu0 0.0
        %1176 = vmatpush1.msra.mxu0 0.0
        %1177 = vmatprep.subr.mxu0 0.0
        %1178 = vmatpush1.msra.mxu0 0.0
        %1179 = vmatprep.subr.mxu0 0.0
        %1180 = vmatpush1.msra.mxu0 0.0
        %1181 = vmatprep.subr.mxu0 0.0
        %1182 = vmatpush1.msra.mxu0 0.0
        %1183 = vmatprep.subr.mxu0 0.0
        %1184 = vmatpush1.msra.mxu0 0.0
        %1185 = vmatprep.subr.mxu0 0.0
        %1186 = vmatpush1.msra.mxu0 0.0
        %1187 = vmatprep.subr.mxu0 0.0
        %1188 = vmatpush1.msra.mxu0 0.0
        %1189 = vmatprep.subr.mxu0 0.0
        %1190 = vmatpush1.msra.mxu0 0.0
        %1191 = vmatprep.subr.mxu0 0.0
        %1192 = vmatpush1.msra.mxu0 0.0
        %1193 = vmatprep.subr.mxu0 0.0
        %1194 = vmatpush1.msra.mxu0 0.0
        %1195 = vmatprep.subr.mxu0 0.0
        %1196 = vmatpush1.msra.mxu0 0.0
        %1197 = vmatprep.subr.mxu0 0.0
        %1198 = vmatpush1.msra.mxu0 0.0
        %1199 = vmatprep.subr.mxu0 0.0
        %1200 = vmatpush1.msra.mxu0 0.0
        %1201 = vmatprep.subr.mxu0 0.0
        %1202 = vmatpush1.msra.mxu0 0.0
        %1203 = vmatprep.subr.mxu0 0.0
        %1204 = vmatpush1.msra.mxu0 0.0
        %1205 = vmatprep.subr.mxu0 0.0
        %1206 = vmatpush1.msra.mxu0 0.0
        %1207 = vmatprep.mubr.f32.mxu0 0.0
        %1208 = vmatmul.mubr.f32.gmra.mrb[0].mxu0 %v1141
        %v1209 = vpop.f32.mrb[0].mxu0
        %v1210 = vadd.f32 %v1138, %v1209
        %v1211 = vpop.f32.mrb[0].mxu0
        %v1212 = vadd.f32 %v1138, %v1211
        %1213 = vdwg.mxu0
        %v1214 = vmul.f32 %v1129, %v1210
        %v1215 = vmul.f32 %v1131, %v1212
        %1216 = vst [vmem:[#allocation2 + $0x8] sm:$0x3] %v1214
        %1217 = vst [vmem:[#allocation2 + $0x10] sm:$0x3] %v1215
        %v1218 = vld [vmem:[#allocation2] sm:$0x3]
        %v1219 = vld [vmem:[#allocation2 + $0x8] sm:$0x3]
        %v1220 = vld [vmem:[#allocation2 + $0x10] sm:$0x3]
        %1224 = vrot.lane.b32.xlu0 %v1218, 17
        %v1225 = vpop.permute.xlu0 %1224
        %1226 = vrot.lane.b32.xlu0 %v1219, 17
        %v1227 = vpop.permute.xlu0 %1226
        %1228 = vrot.lane.b32.xlu0 %v1220, 17
        %v1229 = vpop.permute.xlu0 %1228
        %v1230 = vsel %vm511, %v1225, %v1227
        %v1231 = vsel %vm511, %v1227, %v1229
        %v1234 = vsel %vm500, %v1230, 0.0
        %v1235 = vsel %vm501, %v1231, 0.0
        %1236 = vst [vmem:[#allocation3] sm:$0x3] %v1234
        %1237 = vst [vmem:[#allocation3 + $0x8] sm:$0x3] %v1235
        %v1238 = vld [vmem:[#allocation2] sm:$0x3]
        %v1239 = vld [vmem:[#allocation2 + $0x8] sm:$0x3]
        %v1240 = vld [vmem:[#allocation2 + $0x10] sm:$0x3]
        %v1244 = vrot.slane %v1238, 6
        %v1245 = vrot.slane %v1239, 6
        %v1246 = vrot.slane %v1240, 6
        %1247 = vrot.lane.b32.xlu0 %v1244, 16
        %v1248 = vpop.permute.xlu0 %1247
        %1249 = vrot.lane.b32.xlu0 %v1245, 16
        %v1250 = vpop.permute.xlu0 %1249
        %1251 = vrot.lane.b32.xlu0 %v1246, 16
        %v1252 = vpop.permute.xlu0 %1251
        %v1253 = vsel %vm532, %v1248, %v1250
        %v1254 = vsel %vm532, %v1250, %v1252
        %1257 = vst [vmem:[#allocation3] sm:$0xc] %v1253
        %1258 = vst [vmem:[#allocation3 + $0x8] sm:$0xc] %v1254
        %v1259 = vld [vmem:[#allocation2] sm:$0x3]
        %v1260 = vld [vmem:[#allocation2 + $0x8] sm:$0x3]
        %v1261 = vld [vmem:[#allocation2 + $0x10] sm:$0x3]
        %1265 = vrot.lane.b32.xlu0 %v1259, 15
        %v1266 = vpop.permute.xlu0 %1265
        %1267 = vrot.lane.b32.xlu0 %v1260, 15
        %v1268 = vpop.permute.xlu0 %1267
        %1269 = vrot.lane.b32.xlu0 %v1261, 15
        %v1270 = vpop.permute.xlu0 %1269
        %v1271 = vsel %vm555, %v1266, %v1268
        %v1272 = vsel %vm555, %v1268, %v1270
        %v1275 = vsel %vm544, %v1271, 0.0
        %v1276 = vsel %vm545, %v1272, 0.0
        %v1279 = vrot.slane %v1275, 4
        %v1280 = vrot.slane %v1276, 4
        %1283 = vst [vmem:[#allocation3] sm:$0x30] %v1279
        %1284 = vst [vmem:[#allocation3 + $0x8] sm:$0x30] %v1280
        %v1285 = vld [vmem:[#allocation2] sm:$0x3]
        %v1286 = vld [vmem:[#allocation2 + $0x8] sm:$0x3]
        %v1287 = vld [vmem:[#allocation2 + $0x10] sm:$0x3]
        %1291 = vrot.lane.b32.xlu0 %v1285, 1
        %v1292 = vpop.permute.xlu0 %1291
        %1293 = vrot.lane.b32.xlu0 %v1286, 1
        %v1294 = vpop.permute.xlu0 %1293
        %1295 = vrot.lane.b32.xlu0 %v1287, 1
        %v1296 = vpop.permute.xlu0 %1295
        %v1297 = vsel %vm576, %v1292, %v1294
        %v1298 = vsel %vm576, %v1294, %v1296
        %v1301 = vsel %vm500, %v1297, 0.0
        %v1302 = vsel %vm501, %v1298, 0.0
        %v1305 = vrot.slane %v1301, 2
        %v1306 = vrot.slane %v1302, 2
        %1309 = vst [vmem:[#allocation3] sm:$0xc0] %v1305
        %1310 = vst [vmem:[#allocation3 + $0x8] sm:$0xc0] %v1306
        %v1311 = vld [vmem:[#allocation2 + $0x8] sm:$0x3]
        %v1312 = vld [vmem:[#allocation2 + $0x10] sm:$0x3]
        %1313 = vst [vmem:[#allocation3 + $0x10] sm:$0x3] %v1311
        %1314 = vst [vmem:[#allocation3 + $0x18] sm:$0x3] %v1312
        %v1315 = vld [vmem:[#allocation2 + $0x8] sm:$0x3]
        %v1316 = vld [vmem:[#allocation2 + $0x10] sm:$0x3]
        %v1317 = vld [vmem:[#allocation2 + $0x18] sm:$0x3]
        %1321 = vrot.lane.b32.xlu0 %v1315, 127
        %v1322 = vpop.permute.xlu0 %1321
        %1323 = vrot.lane.b32.xlu0 %v1316, 127
        %v1324 = vpop.permute.xlu0 %1323
        %1325 = vrot.lane.b32.xlu0 %v1317, 127
        %v1326 = vpop.permute.xlu0 %1325
        %v1327 = vsel %vm601, %v1322, %v1324
        %v1328 = vsel %vm601, %v1324, %v1326
        %v1331 = vsel %vm544, %v1327, 0.0
        %v1332 = vsel %vm545, %v1328, 0.0
        %v1335 = vrot.slane %v1331, 6
        %v1336 = vrot.slane %v1332, 6
        %1339 = vst [vmem:[#allocation3 + $0x10] sm:$0xc] %v1335
        %1340 = vst [vmem:[#allocation3 + $0x18] sm:$0xc] %v1336
        %v1341 = vld [vmem:[#allocation2 + $0x8] sm:$0x3]
        %v1342 = vld [vmem:[#allocation2 + $0x10] sm:$0x3]
        %v1343 = vld [vmem:[#allocation2 + $0x18] sm:$0x3]
        %1347 = vrot.lane.b32.xlu0 %v1341, 113
        %v1348 = vpop.permute.xlu0 %1347
        %1349 = vrot.lane.b32.xlu0 %v1342, 113
        %v1350 = vpop.permute.xlu0 %1349
        %1351 = vrot.lane.b32.xlu0 %v1343, 113
        %v1352 = vpop.permute.xlu0 %1351
        %v1353 = vsel %vm622, %v1348, %v1350
        %v1354 = vsel %vm622, %v1350, %v1352
        %v1357 = vsel %vm500, %v1353, 0.0
        %v1358 = vsel %vm501, %v1354, 0.0
        %v1361 = vrot.slane %v1357, 4
        %v1362 = vrot.slane %v1358, 4
        %1365 = vst [vmem:[#allocation3 + $0x10] sm:$0x30] %v1361
        %1366 = vst [vmem:[#allocation3 + $0x18] sm:$0x30] %v1362
        %v1367 = vld [vmem:[#allocation2 + $0x8] sm:$0x3]
        %v1368 = vld [vmem:[#allocation2 + $0x10] sm:$0x3]
        %v1369 = vld [vmem:[#allocation2 + $0x18] sm:$0x3]
        %v1373 = vrot.slane %v1367, 2
        %v1374 = vrot.slane %v1368, 2
        %v1375 = vrot.slane %v1369, 2
        %1376 = vrot.lane.b32.xlu0 %v1373, 112
        %v1377 = vpop.permute.xlu0 %1376
        %1378 = vrot.lane.b32.xlu0 %v1374, 112
        %v1379 = vpop.permute.xlu0 %1378
        %1380 = vrot.lane.b32.xlu0 %v1375, 112
        %v1381 = vpop.permute.xlu0 %1380
        %v1382 = vsel %vm643, %v1377, %v1379
        %v1383 = vsel %vm643, %v1379, %v1381
        %1386 = vst [vmem:[#allocation3 + $0x10] sm:$0xc0] %v1382
        %1387 = vst [vmem:[#allocation3 + $0x18] sm:$0xc0] %v1383
        %v1388 = vld [vmem:[#allocation2 + $0x8] sm:$0x3]
        %v1389 = vld [vmem:[#allocation2 + $0x10] sm:$0x3]
        %v1390 = vld [vmem:[#allocation2 + $0x18] sm:$0x3]
        %1394 = vrot.lane.b32.xlu0 %v1388, 111
        %v1395 = vpop.permute.xlu0 %1394
        %1396 = vrot.lane.b32.xlu0 %v1389, 111
        %v1397 = vpop.permute.xlu0 %1396
        %1398 = vrot.lane.b32.xlu0 %v1390, 111
        %v1399 = vpop.permute.xlu0 %1398
        %v1400 = vsel %vm662, %v1395, %v1397
        %v1401 = vsel %vm662, %v1397, %v1399
        %v1404 = vsel %vm544, %v1400, 0.0
        %v1405 = vsel %vm545, %v1401, 0.0
        %1406 = vst [vmem:[#allocation3 + $0x20] sm:$0x3] %v1404
        %1407 = vst [vmem:[#allocation3 + $0x28] sm:$0x3] %v1405
        %v1408 = vld [vmem:[%s10] sm:$0x3]
        %v1409 = vld [vmem:[#allocation3] sm:$0xff]
        %v1410 = vld [vmem:[#allocation3 + $0x8] sm:$0xff]
        %v1411 = vld [vmem:[#allocation3 + $0x10] sm:$0xff]
        %v1412 = vld [vmem:[#allocation3 + $0x18] sm:$0xff]
        %v1413 = vld [vmem:[#allocation3 + $0x20] sm:$0x3]
        %v1414 = vld [vmem:[#allocation3 + $0x28] sm:$0x3]
        %v1415 = vld [vmem:[%s11] sm:$0x3]
        %1417 = vset.pattern.permute.xlu0 0
        %1418 = vperm.xlu0 %1417, %v1415
        %v1419 = vpop.permute.xlu0 %1418
        %vm1421 = vcmask 146432
        %v1423 = vsel %vm1421, %v1408, 0
        %vm1425 = vcmask 1041408
        %v1427 = vsel %vm1425, %v1413, 0
        %v1430 = vsel %vm1425, %v1414, 0
        %1432 = vmatprep.subr.mxu0 %v1410
        %1433 = vmatpush1.msra.mxu0 %v1409
        %1434 = vmatprep.subr.mxu0 %v1412
        %1435 = vmatpush1.msra.mxu0 %v1411
        %1436 = vmatprep.subr.mxu0 %v1430
        %1437 = vmatpush1.msra.mxu0 %v1427
        %1438 = vmatprep.subr.mxu0 0.0
        %1439 = vmatpush1.msra.mxu0 0.0
        %1440 = vmatprep.subr.mxu0 0.0
        %1441 = vmatpush1.msra.mxu0 0.0
        %1442 = vmatprep.subr.mxu0 0.0
        %1443 = vmatpush1.msra.mxu0 0.0
        %1444 = vmatprep.subr.mxu0 0.0
        %1445 = vmatpush1.msra.mxu0 0.0
        %1446 = vmatprep.subr.mxu0 0.0
        %1447 = vmatpush1.msra.mxu0 0.0
        %1448 = vmatprep.subr.mxu0 0.0
        %1449 = vmatpush1.msra.mxu0 0.0
        %1450 = vmatprep.subr.mxu0 0.0
        %1451 = vmatpush1.msra.mxu0 0.0
        %1452 = vmatprep.subr.mxu0 0.0
        %1453 = vmatpush1.msra.mxu0 0.0
        %1454 = vmatprep.subr.mxu0 0.0
        %1455 = vmatpush1.msra.mxu0 0.0
        %1456 = vmatprep.subr.mxu0 0.0
        %1457 = vmatpush1.msra.mxu0 0.0
        %1458 = vmatprep.subr.mxu0 0.0
        %1459 = vmatpush1.msra.mxu0 0.0
        %1460 = vmatprep.subr.mxu0 0.0
        %1461 = vmatpush1.msra.mxu0 0.0
        %1462 = vmatprep.subr.mxu0 0.0
        %1463 = vmatpush1.msra.mxu0 0.0
        %1464 = vmatprep.subr.mxu0 0.0
        %1465 = vmatpush1.msra.mxu0 0.0
        %1466 = vmatprep.subr.mxu0 0.0
        %1467 = vmatpush1.msra.mxu0 0.0
        %1468 = vmatprep.subr.mxu0 0.0
        %1469 = vmatpush1.msra.mxu0 0.0
        %1470 = vmatprep.subr.mxu0 0.0
        %1471 = vmatpush1.msra.mxu0 0.0
        %1472 = vmatprep.subr.mxu0 0.0
        %1473 = vmatpush1.msra.mxu0 0.0
        %1474 = vmatprep.subr.mxu0 0.0
        %1475 = vmatpush1.msra.mxu0 0.0
        %1476 = vmatprep.subr.mxu0 0.0
        %1477 = vmatpush1.msra.mxu0 0.0
        %1478 = vmatprep.subr.mxu0 0.0
        %1479 = vmatpush1.msra.mxu0 0.0
        %1480 = vmatprep.subr.mxu0 0.0
        %1481 = vmatpush1.msra.mxu0 0.0
        %1482 = vmatprep.subr.mxu0 0.0
        %1483 = vmatpush1.msra.mxu0 0.0
        %1484 = vmatprep.subr.mxu0 0.0
        %1485 = vmatpush1.msra.mxu0 0.0
        %1486 = vmatprep.subr.mxu0 0.0
        %1487 = vmatpush1.msra.mxu0 0.0
        %1488 = vmatprep.subr.mxu0 0.0
        %1489 = vmatpush1.msra.mxu0 0.0
        %1490 = vmatprep.subr.mxu0 0.0
        %1491 = vmatpush1.msra.mxu0 0.0
        %1492 = vmatprep.subr.mxu0 0.0
        %1493 = vmatpush1.msra.mxu0 0.0
        %1494 = vmatprep.subr.mxu0 0.0
        %1495 = vmatpush1.msra.mxu0 0.0
        %1496 = vmatprep.mubr.f32.mxu0 0.0
        %1497 = vmatmul.mubr.f32.gmra.mrb[0].mxu0 %v1423
        %v1498 = vpop.f32.mrb[0].mxu0
        %v1499 = vadd.f32 %v1419, %v1498
        %v1500 = vpop.f32.mrb[0].mxu0
        %v1501 = vadd.f32 %v1419, %v1500
        %1502 = vdwg.mxu0
        %v1503 = vxor.u32 %v1499, 2147483648
        %v1504 = vxor.u32 %v1501, 2147483648
        %v1505 = vmul.f32 %v1503, 1.442695
        %v1506 = vpow.pop %v1505
        %v1507 = vmul.f32 %v1504, 1.442695
        %v1508 = vpow.pop %v1507
        %v1509 = vadd.f32 %v1506, 1.0
        %v1510 = vadd.f32 %v1508, 1.0
        %v1511 = vrcp.pop %v1509
        %v1512 = vmul.f32 1.0, %v1511
        %v1513 = vrcp.pop %v1510
        %v1514 = vmul.f32 1.0, %v1513
        %v1515 = vlaneseq
        %v1516 = vshrl.u32 %v1515, 7
        %v1517 = vsub.s32 0, %v1516
        %v1518 = vrot.slane %v1512, %v1517
        %v1519 = vlaneseq
        %v1520 = vshrl.u32 %v1519, 7
        %v1521 = vsub.s32 0, %v1520
        %v1522 = vrot.slane %v1514, %v1521
        %v1525 = vcombine.low %v1518, %v1522
        %v1527 = vmul.f32 %v483, %v1525
        %v1528 = vlaneseq
        %v1529 = vshrl.u32 %v1528, 7
        %v1530 = vsub.s32 1, %v1529
        %v1531 = vrot.slane %v1512, %v1530
        %v1532 = vlaneseq
        %v1533 = vshrl.u32 %v1532, 7
        %v1534 = vsub.s32 1, %v1533
        %v1535 = vrot.slane %v1514, %v1534
        %v1538 = vcombine.low %v1531, %v1535
        %v1540 = vmul.f32 %v484, %v1538
        %v1541 = vadd.f32 %v1527, %v1540
        %1542 = vst [vmem:[%s444] sm:$0xff] %v1541
        %s1543 = sand.u32 %s299, 1
        %s1544 = scalar_lea.sflag [#allocation6], %s1543
        %s1545 = sand.u32 %s299, 1
        %s1546 = smul.addr %s1545, 8
        %s1547 = scalar_lea.vmem [#allocation7], %s1546
        // Predicated region
        $region73: #{tpu_custom_call.1} parent=67 // pred_check
          %p1548 = pneg %p309
        $region74: #{tpu_custom_call.1} parent=67 // pred_check_branch
          %1550 = sbr.rel (%p1548) target = $region76
        $region75: #{tpu_custom_call.1} parent=67 // pred_region
          %s1552 = ssub.s32 128, 128
          %1553 = vsyncadd %s1544, %s1552
          %s1554 = smul.addr %s29, 2
          %s1555 = smul.addr %s1554, 64
          %s1556 = scalar_lea.hbm %s12, %s1555
          %s1558 = sshll.u32 %s1547, 4
          %s1559 = int_to_ptr.vmem [resolvable:$true] %s1558
          %1561 = dma.vmem_to_hbm [thread:$0]  %s1559, 128, %s1556, %s1544
        $region76: #{tpu_custom_call.1} parent=67 // pred_fallthru
          _
      $region68: #{tpu_custom_call.1} parent=5 // pred_fallthru
        _
      %p1562 = scmp.le.s32.totalorder 2, %s24
      // Predicated region
      $region77: #{tpu_custom_call.1} parent=5 // pred_check
        %p1563 = pneg %p1562
      $region78: #{tpu_custom_call.1} parent=5 // pred_check_branch
        %1565 = sbr.rel (%p1563) target = $region80
      $region79: #{tpu_custom_call.1} parent=5 // pred_region
        %s1566 = ssub.s32 %s24, 2
        // Predicated region
        $region81: #{tpu_custom_call.1} parent=79 // pred_check
          %p1567 = pneg %p315
        $region82: #{tpu_custom_call.1} parent=79 // pred_check_branch
          %1569 = sbr.rel (%p1567) target = $region84
        $region83: #{tpu_custom_call.1} parent=79 // pred_region
          %s1570 = sand.u32 %s300, 1
          %s1571 = scalar_lea.sflag [#allocation6], %s1570
          %s1572 = sand.u32 %s300, 1
          %s1573 = smul.addr %s1572, 8
          %s1574 = scalar_lea.vmem [#allocation7], %s1573
          %1575 = dma.done %s1571, 128
        $region84: #{tpu_custom_call.1} parent=79 // pred_fallthru
          _
      $region80: #{tpu_custom_call.1} parent=5 // pred_fallthru
        _
    $region6: #{tpu_custom_call.1} parent=1 // loop_footer
      %s28 = sadd.s32 1, %s24
    $region7: #{tpu_custom_call.1} parent=1 // loop_footer_branch
      %23 = sbr.rel target = $region3
    $region8: #{tpu_custom_call.1} parent=1 // loop_exit
      _
    %1576 = vsyncpa [#allocation5], 1
    %s1577 = scalar_lea.sflag [#allocation5], 1
    %1578 = vsyncpa %s1577, 1
    %1579 = vsyncpa [#allocation6], 1
    %s1580 = scalar_lea.sflag [#allocation6], 1
    %1581 = vsyncpa %s1580, 1

</llo_original>
